<compile_context>
chip_gen: v7x
topology: tpu7x:2x2x1
jax: 0.10.0
libtpu: 0.0.40
codegen_flags: <defaults>
</compile_context>

<pallas_src>
import functools

import jax
import jax.numpy as jnp
from jax import lax
from jax.experimental import pallas as pl
from jax.experimental.pallas import tpu as pltpu

PRIMITIVES = ("none", "skip_connect", "nor_conv_1x1", "nor_conv_3x3", "avg_pool_3x3")
NUM_VERTICES = 4          # NB-201 search space
BN_EPS = 1e-5             # torch.nn.BatchNorm2d default
_MAX_LANE_TILE = 4096     # lane-tile cap (multiple of 128); keeps tiles well inside VMEM
_VMEM_LIMIT_BYTES = 48 * 1024 * 1024   # < 64 MiB physical VMEM on v7x, generous vs. defaults


def _round_up(a, b):
    return (a + b - 1) // b * b


# ----------------------------------------------------------------------------- kernels
def _conv_bn_gate_kernel(p_ref, w_ref, g_ref, o_ref, ssum_ref, ssq_ref, *, inv_n):
    """Fused relu-conv (as one matmul) -> BatchNorm(affine=False) -> gate-weighted
    curriculum reduction.

    grid = (2, num_nhw_tiles):
      phase 0: y = W_stacked @ patches_tile ; accumulate per-row sum / sum-of-squares.
      phase 1: recompute y, normalize per curriculum row-slab with the full-NHW stats,
               fold gate + curriculum sum via a small (c_out, ncur*c_out) matmul, store.
    """
    phase = pl.program_id(0)
    t = pl.program_id(1)

    # Single MXU matmul: (ncur*c_out, kk*c_in) x (kk*c_in, tile), bf16 in, f32 accumulate.
    y = jnp.dot(w_ref[...], p_ref[...], preferred_element_type=jnp.float32)

    @pl.when(jnp.logical_and(phase == 0, t == 0))
    def _():
        ssum_ref[...] = jnp.zeros_like(ssum_ref)
        ssq_ref[...] = jnp.zeros_like(ssq_ref)

    @pl.when(phase == 0)
    def _():
        ssum_ref[...] += jnp.sum(y, axis=1, keepdims=True)
        ssq_ref[...] += jnp.sum(y * y, axis=1, keepdims=True)

    @pl.when(phase == 1)
    def _():
        # BatchNorm2d(affine=False), training-mode biased batch stats over the TRUE N*H*W
        # (zero-padded lanes contribute 0 to both sums; inv_n uses the unpadded count).
        mean = ssum_ref[...] * inv_n
        var = jnp.maximum(ssq_ref[...] * inv_n - mean * mean, 0.0)
        ystd = (y - mean) * lax.rsqrt(var + BN_EPS)
        # gate-weighted sum over curriculums == kron(gate, I_cout) @ ystd  (tiny matmul).
        o_ref[...] = jnp.dot(g_ref[...], ystd, preferred_element_type=jnp.float32)


def _avgpool_kernel(xp_ref, coef_ref, o_ref):
    """avg_pool_3x3 (stride 1, pad 1, count_include_pad=False), pre-scaled by sum(gate).

    Input is the zero-padded activation (C*N, H+2, W+2); the 3x3 window sum is built from
    shifted slices in VMEM (no 9x im2col materialization in HBM)."""
    h, w = o_ref.shape[1], o_ref.shape[2]
    xp = xp_ref[...]
    h3 = xp[:, :, 0:w] + xp[:, :, 1:w + 1] + xp[:, :, 2:w + 2]       # horizontal 3-sum
    v3 = h3[:, 0:h, :] + h3[:, 1:h + 1, :] + h3[:, 2:h + 2, :]       # vertical 3-sum
    o_ref[...] = v3 * coef_ref[...]                                  # coef = sum(gate)/count


# ----------------------------------------------------------------------------- glue helpers
def _to_cf(x):
    # (N, C, H, W) -> (C, N*H*W)
    n, c, h, w = x.shape
    return jnp.transpose(x, (1, 0, 2, 3)).reshape(c, n * h * w)


def _from_cf(y, n, h, w):
    c = y.shape[0]
    return jnp.transpose(y.reshape(c, n, h, w), (1, 0, 2, 3))


def _prep_conv_inputs(x, ksz, lane_tile):
    """ReLU (hoisted) -> im2col (for 3x3) -> (kk*C_in, NHW_pad) bf16 patch matrix."""
    n, c, h, w = x.shape
    nhw = n * h * w
    xr = jnp.maximum(x, 0.0)                       # ReLU commutes with zero padding
    if ksz == 1:
        pm = _to_cf(xr)                            # (C_in, NHW)
    else:
        xp = jnp.pad(xr, ((0, 0), (0, 0), (1, 1), (1, 1)))
        taps = [_to_cf(xp[:, :, kh:kh + h, kw:kw + w])
                for kh in range(3) for kw in range(3)]
        pm = jnp.concatenate(taps, axis=0)         # (9*C_in, NHW), row = tap*C_in + c
    nhw_pad = _round_up(nhw, lane_tile)            # lane-dense, multiple of 128
    if nhw_pad != nhw:
        pm = jnp.pad(pm, ((0, 0), (0, nhw_pad - nhw)))
    return pm.astype(jnp.bfloat16)


def _prep_weights(w_all):
    """(ncur, c_out, c_in, k, k) -> (ncur*c_out, k*k*c_in) bf16, matching the patch row order."""
    ncur, c_out, c_in, ksz = w_all.shape[0], w_all.shape[1], w_all.shape[2], w_all.shape[3]
    if ksz == 1:
        wm = w_all.reshape(ncur * c_out, c_in)
    else:
        wm = jnp.transpose(w_all, (0, 1, 3, 4, 2)).reshape(ncur * c_out, ksz * ksz * c_in)
    return wm.astype(jnp.bfloat16)


def conv_bn_edge(patches, w_all, gate_vec, n, h, w, nhw, lane_tile):
    """Sum_k gate[k] * BN(conv(relu(x), W_k)) with all curriculums folded into one matmul."""
    ncur, c_out = int(w_all.shape[0]), int(w_all.shape[1])
    kdim, nhw_pad = patches.shape
    num_tiles = nhw_pad // lane_tile
    m = ncur * c_out

    wm = _prep_weights(w_all)                                         # (M, K) bf16
    # Gmat[o, i*c_out + q] = gate[i] * delta(o, q)   -> folds gate + curriculum sum.
    gmat = (gate_vec.astype(jnp.float32)[None, :, None] *
            jnp.eye(c_out, dtype=jnp.float32)[:, None, :]).reshape(c_out, m)

    kernel = functools.partial(_conv_bn_gate_kernel, inv_n=1.0 / float(nhw))
    out = pl.pallas_call(
        kernel,
        out_shape=jax.ShapeDtypeStruct((c_out, nhw_pad), jnp.float32),
        grid=(2, num_tiles),                      # (phase, nhw-tile); phase 0 stats, 1 normalize
        in_specs=[
            pl.BlockSpec((kdim, lane_tile), lambda p, t: (0, t)),     # patches tile (shared ReLU/im2col)
            pl.BlockSpec((m, kdim), lambda p, t: (0, 0)),             # stacked curriculum weights
            pl.BlockSpec((c_out, m), lambda p, t: (0, 0)),            # gate matrix
        ],
        # Output block index is pinned to 0 during the stats phase so no uninitialized
        # tile is written back before phase 1 produces it.
        out_specs=pl.BlockSpec((c_out, lane_tile), lambda p, t: (0, t * p)),
        scratch_shapes=[pltpu.VMEM((m, 1), jnp.float32),              # per-row sum
                        pltpu.VMEM((m, 1), jnp.float32)],             # per-row sum of squares
        compiler_params=pltpu.CompilerParams(
            dimension_semantics=("arbitrary", "arbitrary"),           # BN reduction -> sequential
            vmem_limit_bytes=_VMEM_LIMIT_BYTES),
    )(patches, wm, gmat)
    return _from_cf(out[:, :nhw], n, h, w)


def avg_pool_edge(x, scale):
    """scale * avg_pool_3x3(x)  (pool has no per-curriculum parameters)."""
    n, c, h, w = x.shape
    hp, wp = h + 2, w + 2
    xcf = jnp.transpose(x, (1, 0, 2, 3))                              # (C, N, H, W)
    xp = jnp.pad(xcf, ((0, 0), (0, 0), (1, 1), (1, 1))).reshape(c * n, hp, wp)

    ones = jnp.pad(jnp.ones((h, w), jnp.float32), ((1, 1), (1, 1)))
    cnt = sum(ones[kh:kh + h, kw:kw + w] for kh in range(3) for kw in range(3))
    coef = (scale / cnt)[None]                                        # (1, H, W)

    out = pl.pallas_call(
        _avgpool_kernel,
        out_shape=jax.ShapeDtypeStruct((c * n, h, w), jnp.float32),
        grid=(1,),
        in_specs=[pl.BlockSpec((c * n, hp, wp), lambda i: (0, 0, 0)),
                  pl.BlockSpec((1, h, w), lambda i: (0, 0, 0))],
        out_specs=pl.BlockSpec((c * n, h, w), lambda i: (0, 0, 0)),
        compiler_params=pltpu.CompilerParams(
            dimension_semantics=("arbitrary",),
            vmem_limit_bytes=_VMEM_LIMIT_BYTES),
    )(xp, coef)
    return jnp.transpose(out.reshape(c, n, h, w), (1, 0, 2, 3))


# ----------------------------------------------------------------------------- cell
def dag_forward(inputs, genotype, gate, num_vertices, edge_fn):
    """Exact reproduction of NB201CloseCell.forward DAG wiring (genotype is static Python)."""
    valid_input = [0]
    for to_ in range(1, num_vertices):
        for input_ in valid_input:
            if genotype[to_][input_] > 0:
                valid_input.append(to_)
                break
    valid_output = [num_vertices - 1]
    for from_ in range(num_vertices - 2, -1, -1):
        for output_ in valid_output:
            if genotype[output_][from_] > 0:
                valid_output.append(from_)

    states = [inputs]
    ind = -1
    for to_ in range(1, num_vertices):
        state = jnp.zeros(inputs.shape, inputs.dtype)
        for from_ in range(to_):
            ind += 1
            if from_ in valid_input and to_ in valid_output:
                state = state + edge_fn(states[from_], from_, genotype[to_][from_], gate[ind])
        states.append(state)
    return states[-1]


class NB201CloseCellPallas:
    """Pallas implementation of NB201CloseCell forward (NB-201 search space,
    stride=1 cell, bn_affine=False, 6 curriculums)."""

    def __init__(self, num_channels, num_out_channels, stride=1, num_curriculums=6, seed=0):
        assert stride == 1 and num_channels == num_out_channels, \
            "only the non-reduction NB-201 cell is implemented"
        # TODO(synk): stride-2 reduction variants (FactorizedReduce / strided conv & pool) not implemented.
        self.num_channels = num_channels
        self.num_out_channels = num_out_channels
        self.num_curriculums = num_curriculums
        self.num_vertices = NUM_VERTICES

        k1, k2 = jax.random.split(jax.random.PRNGKey(seed))
        c, co, nc = num_channels, num_out_channels, num_curriculums
        # deterministic synthetic conv weights (Conv2d bias=False; BN affine=False)
        self.w1 = jax.random.normal(k1, (nc, co, c, 1, 1), jnp.float32) / jnp.sqrt(float(c))
        self.w3 = jax.random.normal(k2, (nc, co, c, 3, 3), jnp.float32) / jnp.sqrt(float(9 * c))

    def _edge(self, x, from_idx, op_idx, gate_vec, is_training, cache, lane_tile):
        name = PRIMITIVES[int(op_idx)]
        if name == "none":
            return jnp.zeros_like(x)                                  # glue: Zero op (stride 1)
        if name == "skip_connect":
            return jnp.sum(gate_vec) * x if is_training else x        # glue: identity
        if name == "avg_pool_3x3":
            scale = jnp.sum(gate_vec) if is_training else 1.0
            return avg_pool_edge(x, scale)                            # Pallas

        ksz = 1 if name == "nor_conv_1x1" else 3
        n, _, h, w = x.shape
        nhw = n * h * w
        key = (from_idx, ksz)
        if key not in cache:                      # share ReLU + im2col per source node
            cache[key] = _prep_conv_inputs(x, ksz, lane_tile)
        patches = cache[key]

        w_all = self.w1 if ksz == 1 else self.w3
        if is_training:
            gvec = gate_vec
        else:
            idx = jnp.argmax(gate_vec)            # eval fast path: only the argmax curriculum
            w_all = jnp.take(w_all, idx, axis=0)[None]
            gvec = jnp.ones((1,), jnp.float32)
        return conv_bn_edge(patches, w_all, gvec, n, h, w, nhw, lane_tile)   # Pallas

    def __call__(self, inputs, genotype_and_gate, is_training=True):
        assert len(genotype_and_gate) == 2
        genotype, gate = genotype_and_gate
        n, _, h, w = inputs.shape
        lane_tile = min(_round_up(n * h * w, 128), _MAX_LANE_TILE)
        cache = {}
        edge_fn = lambda x, fr, op, gv: self._edge(x, fr, op, gv, is_training, cache, lane_tile)
        return dag_forward(inputs, genotype, gate, self.num_vertices, edge_fn)


# ----------------------------------------------------------------------------- pure-JAX reference
def _ref_relu_conv_bn(x, w):
    ksz = w.shape[-1]
    pad = (ksz - 1) // 2
    y = lax.conv_general_dilated(jnp.maximum(x, 0.0), w, (1, 1),
                                 [(pad, pad), (pad, pad)],
                                 dimension_numbers=("NCHW", "OIHW", "NCHW"),
                                 precision=lax.Precision.HIGHEST)
    mean = jnp.mean(y, axis=(0, 2, 3), keepdims=True)
    var = jnp.mean(jnp.square(y - mean), axis=(0, 2, 3), keepdims=True)
    return (y - mean) / jnp.sqrt(var + BN_EPS)


def _ref_avg_pool(x):
    pad = [(0, 0), (0, 0), (1, 1), (1, 1)]
    s = lax.reduce_window(x, 0.0, lax.add, (1, 1, 3, 3), (1, 1, 1, 1), pad)
    cnt = lax.reduce_window(jnp.ones_like(x), 0.0, lax.add, (1, 1, 3, 3), (1, 1, 1, 1), pad)
    return s / cnt


def _ref_edge(cell, is_training, x, from_idx, op_idx, gate_vec):
    name = PRIMITIVES[int(op_idx)]
    if not is_training:
        gate_vec = jax.nn.one_hot(jnp.argmax(gate_vec), gate_vec.shape[0], dtype=jnp.float32)
    if name == "none":
        return jnp.zeros_like(x)
    if name == "skip_connect":
        return jnp.sum(gate_vec) * x
    if name == "avg_pool_3x3":
        return jnp.sum(gate_vec) * _ref_avg_pool(x)
    w_all = cell.w1 if name == "nor_conv_1x1" else cell.w3
    return sum(gate_vec[i] * _ref_relu_conv_bn(x, w_all[i]) for i in range(cell.num_curriculums))


# ----------------------------------------------------------------------------- main
if __name__ == "__main__":
    N, C, H, W = 2, 4, 16, 16
    num_cur = 6
    num_edges = NUM_VERTICES * (NUM_VERTICES - 1) // 2      # 6 edges

    key = jax.random.PRNGKey(0)
    kx, kg = jax.random.split(key)
    x = jax.random.normal(kx, (N, C, H, W), jnp.float32)

    # genotype[to][from]: op indices into PRIMITIVES (diag/upper unused, as in NB-201)
    genotype = ((0, 0, 0, 0),
                (3, 0, 0, 0),    # 0->1: nor_conv_3x3
                (2, 1, 0, 0),    # 0->2: nor_conv_1x1, 1->2: skip_connect
                (1, 4, 3, 0))    # 0->3: skip_connect, 1->3: avg_pool_3x3, 2->3: nor_conv_3x3
    gate = jax.nn.softmax(jax.random.normal(kg, (num_edges, num_cur), jnp.float32), axis=-1)

    cell = NB201CloseCellPallas(num_channels=C, num_out_channels=C, stride=1,
                                num_curriculums=num_cur, seed=0)

    fwd_train = jax.jit(lambda xx, gg: cell(xx, (genotype, gg), True))
    fwd_eval = jax.jit(lambda xx, gg: cell(xx, (genotype, gg), False))

    out_tr = jax.block_until_ready(fwd_train(x, gate))
    out_ev = jax.block_until_ready(fwd_eval(x, gate))

    ref_tr = jax.block_until_ready(
        dag_forward(x, genotype, gate, NUM_VERTICES, functools.partial(_ref_edge, cell, True)))
    ref_ev = jax.block_until_ready(
        dag_forward(x, genotype, gate, NUM_VERTICES, functools.partial(_ref_edge, cell, False)))

    assert out_tr.shape == x.shape and out_tr.dtype == jnp.float32
    assert out_ev.shape == x.shape and out_ev.dtype == jnp.float32
    err_tr = float(jnp.max(jnp.abs(out_tr - ref_tr)))
    err_ev = float(jnp.max(jnp.abs(out_ev - ref_ev)))
    # bf16 matmul inputs with f32 accumulation; errors stay well inside this tolerance.
    assert jnp.allclose(out_tr, ref_tr, atol=5e-2, rtol=5e-2), f"train max abs err {err_tr}"
    assert jnp.allclose(out_ev, ref_ev, atol=5e-2, rtol=5e-2), f"eval max abs err {err_ev}"
    print("KERNEL_OK")
</pallas_src>

<mosaic_0001>
module attributes {stable_mosaic.version = 11 : i64} {
  func.func @_conv_bn_gate_kernel(%arg0: i32, %arg1: i32, %arg2: memref<4x512xbf16, #tpu.memory_space<vmem>>, %arg3: memref<24x4xbf16, #tpu.memory_space<vmem>>, %arg4: memref<4x24xf32, #tpu.memory_space<vmem>>, %arg5: memref<4x512xf32, #tpu.memory_space<vmem>>, %arg6: memref<24x1xf32, #tpu.memory_space<vmem>>, %arg7: memref<24x1xf32, #tpu.memory_space<vmem>>) attributes {dimension_semantics = [#tpu.dimension_semantics<arbitrary>, #tpu.dimension_semantics<arbitrary>], iteration_bounds = array<i64: 2, 1>, scalar_prefetch = 0 : i64, scratch_operands = 2 : i64, tpu.core_type = #tpu.core_type<tc>, window_params = [{transform_indices = @transform_0, window_bounds = array<i64: 4, 512>}, {pipeline_mode = #tpu.pipeline_mode<synchronous>, transform_indices = @transform_1, window_bounds = array<i64: 24, 4>}, {pipeline_mode = #tpu.pipeline_mode<synchronous>, transform_indices = @transform_2, window_bounds = array<i64: 4, 24>}, {transform_indices = @transform_3, window_bounds = array<i64: 4, 512>}]} {
    %c0 = arith.constant 0 : index
    %c0_0 = arith.constant 0 : index
    %0 = vector.load %arg3[%c0, %c0_0] : memref<24x4xbf16, #tpu.memory_space<vmem>>, vector<24x4xbf16>
    %c0_1 = arith.constant 0 : index
    %c0_2 = arith.constant 0 : index
    %1 = vector.load %arg2[%c0_1, %c0_2] : memref<4x512xbf16, #tpu.memory_space<vmem>>, vector<4x512xbf16>
    %cst = arith.constant dense<0.000000e+00> : vector<24x512xf32>
    %2 = tpu.matmul %0, %1, %cst {dimension_numbers = #tpu.dot_dimension_numbers<[1], [0], [0], [1], [0, 0, 1, 1], [], []>} : vector<24x4xbf16>, vector<4x512xbf16>, vector<24x512xf32> -> vector<24x512xf32>
    %c0_i32 = arith.constant 0 : i32
    %3 = arith.cmpi eq, %arg0, %c0_i32 : i32
    %c0_i32_3 = arith.constant 0 : i32
    %4 = arith.cmpi eq, %arg1, %c0_i32_3 : i32
    %5 = arith.andi %3, %4 : i1
    %6 = arith.extui %5 : i1 to i32
    %c0_i32_4 = arith.constant 0 : i32
    %7 = arith.cmpi ne, %6, %c0_i32_4 : i32
    scf.if %7 {
      %cst_8 = arith.constant 0.000000e+00 : f32
      %14 = vector.broadcast %cst_8 : f32 to vector<24x1xf32>
      %c0_9 = arith.constant 0 : index
      %c0_10 = arith.constant 0 : index
      %15 = vector.load %arg6[%c0_9, %c0_10] : memref<24x1xf32, #tpu.memory_space<vmem>>, vector<24x1xf32>
      tpu.vector_store %arg6[%c0_9, %c0_10], %14 {strides = array<i32>} : memref<24x1xf32, #tpu.memory_space<vmem>>, vector<24x1xf32>,
      %cst_11 = arith.constant 0.000000e+00 : f32
      %16 = vector.broadcast %cst_11 : f32 to vector<24x1xf32>
      %c0_12 = arith.constant 0 : index
      %c0_13 = arith.constant 0 : index
      %17 = vector.load %arg7[%c0_12, %c0_13] : memref<24x1xf32, #tpu.memory_space<vmem>>, vector<24x1xf32>
      tpu.vector_store %arg7[%c0_12, %c0_13], %16 {strides = array<i32>} : memref<24x1xf32, #tpu.memory_space<vmem>>, vector<24x1xf32>,
    } else {
    }
    %c0_i32_5 = arith.constant 0 : i32
    %8 = arith.cmpi eq, %arg0, %c0_i32_5 : i32
    %9 = arith.extui %8 : i1 to i32
    %c0_i32_6 = arith.constant 0 : i32
    %10 = arith.cmpi ne, %9, %c0_i32_6 : i32
    scf.if %10 {
      %c0_8 = arith.constant 0 : index
      %c0_9 = arith.constant 0 : index
      %14 = vector.load %arg6[%c0_8, %c0_9] : memref<24x1xf32, #tpu.memory_space<vmem>>, vector<24x1xf32>
      %cst_10 = arith.constant dense<0.000000e+00> : vector<24xf32>
      %15 = vector.multi_reduction <add>, %2, %cst_10 [1] : vector<24x512xf32> to vector<24xf32>
      %16 = vector.shape_cast %15 : vector<24xf32> to vector<24x1xf32>
      %17 = arith.addf %14, %16 : vector<24x1xf32>
      %c0_11 = arith.constant 0 : index
      %c0_12 = arith.constant 0 : index
      %18 = vector.load %arg6[%c0_11, %c0_12] : memref<24x1xf32, #tpu.memory_space<vmem>>, vector<24x1xf32>
      tpu.vector_store %arg6[%c0_11, %c0_12], %17 {strides = array<i32>} : memref<24x1xf32, #tpu.memory_space<vmem>>, vector<24x1xf32>,
      %c0_13 = arith.constant 0 : index
      %c0_14 = arith.constant 0 : index
      %19 = vector.load %arg7[%c0_13, %c0_14] : memref<24x1xf32, #tpu.memory_space<vmem>>, vector<24x1xf32>
      %20 = arith.mulf %2, %2 : vector<24x512xf32>
      %cst_15 = arith.constant dense<0.000000e+00> : vector<24xf32>
      %21 = vector.multi_reduction <add>, %20, %cst_15 [1] : vector<24x512xf32> to vector<24xf32>
      %22 = vector.shape_cast %21 : vector<24xf32> to vector<24x1xf32>
      %23 = arith.addf %19, %22 : vector<24x1xf32>
      %c0_16 = arith.constant 0 : index
      %c0_17 = arith.constant 0 : index
      %24 = vector.load %arg7[%c0_16, %c0_17] : memref<24x1xf32, #tpu.memory_space<vmem>>, vector<24x1xf32>
      tpu.vector_store %arg7[%c0_16, %c0_17], %23 {strides = array<i32>} : memref<24x1xf32, #tpu.memory_space<vmem>>, vector<24x1xf32>,
    } else {
    }
    %c1_i32 = arith.constant 1 : i32
    %11 = arith.cmpi eq, %arg0, %c1_i32 : i32
    %12 = arith.extui %11 : i1 to i32
    %c0_i32_7 = arith.constant 0 : i32
    %13 = arith.cmpi ne, %12, %c0_i32_7 : i32
    scf.if %13 {
      %c0_8 = arith.constant 0 : index
      %c0_9 = arith.constant 0 : index
      %14 = vector.load %arg6[%c0_8, %c0_9] : memref<24x1xf32, #tpu.memory_space<vmem>>, vector<24x1xf32>
      %cst_10 = arith.constant 0.001953125 : f32
      %15 = vector.broadcast %cst_10 : f32 to vector<24x1xf32>
      %16 = arith.mulf %14, %15 : vector<24x1xf32>
      %c0_11 = arith.constant 0 : index
      %c0_12 = arith.constant 0 : index
      %17 = vector.load %arg7[%c0_11, %c0_12] : memref<24x1xf32, #tpu.memory_space<vmem>>, vector<24x1xf32>
      %cst_13 = arith.constant 0.001953125 : f32
      %18 = vector.broadcast %cst_13 : f32 to vector<24x1xf32>
      %19 = arith.mulf %17, %18 : vector<24x1xf32>
      %20 = arith.mulf %16, %16 : vector<24x1xf32>
      %21 = arith.subf %19, %20 : vector<24x1xf32>
      %cst_14 = arith.constant 0.000000e+00 : f32
      %22 = vector.broadcast %cst_14 : f32 to vector<24x1xf32>
      %23 = arith.maximumf %21, %22 : vector<24x1xf32>
      %24 = vector.broadcast %16 : vector<24x1xf32> to vector<24x512xf32>
      %25 = arith.subf %2, %24 : vector<24x512xf32>
      %cst_15 = arith.constant 9.99999974E-6 : f32
      %26 = vector.broadcast %cst_15 : f32 to vector<24x1xf32>
      %27 = arith.addf %23, %26 : vector<24x1xf32>
      %28 = math.rsqrt %27 : vector<24x1xf32>
      %29 = vector.broadcast %28 : vector<24x1xf32> to vector<24x512xf32>
      %30 = arith.mulf %25, %29 : vector<24x512xf32>
      %c0_16 = arith.constant 0 : index
      %c0_17 = arith.constant 0 : index
      %31 = vector.load %arg4[%c0_16, %c0_17] : memref<4x24xf32, #tpu.memory_space<vmem>>, vector<4x24xf32>
      %cst_18 = arith.constant dense<0.000000e+00> : vector<4x512xf32>
      %32 = tpu.matmul %31, %30, %cst_18 {dimension_numbers = #tpu.dot_dimension_numbers<[1], [0], [0], [1], [0, 0, 1, 1], [], []>} : vector<4x24xf32>, vector<24x512xf32>, vector<4x512xf32> -> vector<4x512xf32>
      %c0_19 = arith.constant 0 : index
      %c0_20 = arith.constant 0 : index
      %33 = vector.load %arg5[%c0_19, %c0_20] : memref<4x512xf32, #tpu.memory_space<vmem>>, vector<4x512xf32>
      tpu.vector_store %arg5[%c0_19, %c0_20], %32 {strides = array<i32>} : memref<4x512xf32, #tpu.memory_space<vmem>>, vector<4x512xf32>,
    } else {
    }
    return
  }
  func.func @transform_0(%arg0: i32, %arg1: i32) -> (i32, i32) {
    %c0_i32 = arith.constant 0 : i32
    %c0_i32_0 = arith.constant 0 : i32
    return %c0_i32, %arg1 : i32, i32
  }
  func.func @transform_1(%arg0: i32, %arg1: i32) -> (i32, i32) {
    %c0_i32 = arith.constant 0 : i32
    %c0_i32_0 = arith.constant 0 : i32
    %c0_i32_1 = arith.constant 0 : i32
    return %c0_i32, %c0_i32_0 : i32, i32
  }
  func.func @transform_2(%arg0: i32, %arg1: i32) -> (i32, i32) {
    %c0_i32 = arith.constant 0 : i32
    %c0_i32_0 = arith.constant 0 : i32
    %c0_i32_1 = arith.constant 0 : i32
    return %c0_i32, %c0_i32_0 : i32, i32
  }
  func.func @transform_3(%arg0: i32, %arg1: i32) -> (i32, i32) {
    %0 = arith.muli %arg1, %arg0 : i32
    %c0_i32 = arith.constant 0 : i32
    %c0_i32_0 = arith.constant 0 : i32
    return %c0_i32, %0 : i32, i32
  }
}

module attributes {stable_mosaic.version = 11 : i64} {
  func.func @_conv_bn_gate_kernel(%arg0: i32, %arg1: i32, %arg2: memref<36x512xbf16, #tpu.memory_space<vmem>>, %arg3: memref<24x36xbf16, #tpu.memory_space<vmem>>, %arg4: memref<4x24xf32, #tpu.memory_space<vmem>>, %arg5: memref<4x512xf32, #tpu.memory_space<vmem>>, %arg6: memref<24x1xf32, #tpu.memory_space<vmem>>, %arg7: memref<24x1xf32, #tpu.memory_space<vmem>>) attributes {dimension_semantics = [#tpu.dimension_semantics<arbitrary>, #tpu.dimension_semantics<arbitrary>], iteration_bounds = array<i64: 2, 1>, scalar_prefetch = 0 : i64, scratch_operands = 2 : i64, tpu.core_type = #tpu.core_type<tc>, window_params = [{transform_indices = @transform_0, window_bounds = array<i64: 36, 512>}, {pipeline_mode = #tpu.pipeline_mode<synchronous>, transform_indices = @transform_1, window_bounds = array<i64: 24, 36>}, {pipeline_mode = #tpu.pipeline_mode<synchronous>, transform_indices = @transform_2, window_bounds = array<i64: 4, 24>}, {transform_indices = @transform_3, window_bounds = array<i64: 4, 512>}]} {
    %c0 = arith.constant 0 : index
    %c0_0 = arith.constant 0 : index
    %0 = vector.load %arg3[%c0, %c0_0] : memref<24x36xbf16, #tpu.memory_space<vmem>>, vector<24x36xbf16>
    %c0_1 = arith.constant 0 : index
    %c0_2 = arith.constant 0 : index
    %1 = vector.load %arg2[%c0_1, %c0_2] : memref<36x512xbf16, #tpu.memory_space<vmem>>, vector<36x512xbf16>
    %cst = arith.constant dense<0.000000e+00> : vector<24x512xf32>
    %2 = tpu.matmul %0, %1, %cst {dimension_numbers = #tpu.dot_dimension_numbers<[1], [0], [0], [1], [0, 0, 1, 1], [], []>} : vector<24x36xbf16>, vector<36x512xbf16>, vector<24x512xf32> -> vector<24x512xf32>
    %c0_i32 = arith.constant 0 : i32
    %3 = arith.cmpi eq, %arg0, %c0_i32 : i32
    %c0_i32_3 = arith.constant 0 : i32
    %4 = arith.cmpi eq, %arg1, %c0_i32_3 : i32
    %5 = arith.andi %3, %4 : i1
    %6 = arith.extui %5 : i1 to i32
    %c0_i32_4 = arith.constant 0 : i32
    %7 = arith.cmpi ne, %6, %c0_i32_4 : i32
    scf.if %7 {
      %cst_8 = arith.constant 0.000000e+00 : f32
      %14 = vector.broadcast %cst_8 : f32 to vector<24x1xf32>
      %c0_9 = arith.constant 0 : index
      %c0_10 = arith.constant 0 : index
      %15 = vector.load %arg6[%c0_9, %c0_10] : memref<24x1xf32, #tpu.memory_space<vmem>>, vector<24x1xf32>
      tpu.vector_store %arg6[%c0_9, %c0_10], %14 {strides = array<i32>} : memref<24x1xf32, #tpu.memory_space<vmem>>, vector<24x1xf32>,
      %cst_11 = arith.constant 0.000000e+00 : f32
      %16 = vector.broadcast %cst_11 : f32 to vector<24x1xf32>
      %c0_12 = arith.constant 0 : index
      %c0_13 = arith.constant 0 : index
      %17 = vector.load %arg7[%c0_12, %c0_13] : memref<24x1xf32, #tpu.memory_space<vmem>>, vector<24x1xf32>
      tpu.vector_store %arg7[%c0_12, %c0_13], %16 {strides = array<i32>} : memref<24x1xf32, #tpu.memory_space<vmem>>, vector<24x1xf32>,
    } else {
    }
    %c0_i32_5 = arith.constant 0 : i32
    %8 = arith.cmpi eq, %arg0, %c0_i32_5 : i32
    %9 = arith.extui %8 : i1 to i32
    %c0_i32_6 = arith.constant 0 : i32
    %10 = arith.cmpi ne, %9, %c0_i32_6 : i32
    scf.if %10 {
      %c0_8 = arith.constant 0 : index
      %c0_9 = arith.constant 0 : index
      %14 = vector.load %arg6[%c0_8, %c0_9] : memref<24x1xf32, #tpu.memory_space<vmem>>, vector<24x1xf32>
      %cst_10 = arith.constant dense<0.000000e+00> : vector<24xf32>
      %15 = vector.multi_reduction <add>, %2, %cst_10 [1] : vector<24x512xf32> to vector<24xf32>
      %16 = vector.shape_cast %15 : vector<24xf32> to vector<24x1xf32>
      %17 = arith.addf %14, %16 : vector<24x1xf32>
      %c0_11 = arith.constant 0 : index
      %c0_12 = arith.constant 0 : index
      %18 = vector.load %arg6[%c0_11, %c0_12] : memref<24x1xf32, #tpu.memory_space<vmem>>, vector<24x1xf32>
      tpu.vector_store %arg6[%c0_11, %c0_12], %17 {strides = array<i32>} : memref<24x1xf32, #tpu.memory_space<vmem>>, vector<24x1xf32>,
      %c0_13 = arith.constant 0 : index
      %c0_14 = arith.constant 0 : index
      %19 = vector.load %arg7[%c0_13, %c0_14] : memref<24x1xf32, #tpu.memory_space<vmem>>, vector<24x1xf32>
      %20 = arith.mulf %2, %2 : vector<24x512xf32>
      %cst_15 = arith.constant dense<0.000000e+00> : vector<24xf32>
      %21 = vector.multi_reduction <add>, %20, %cst_15 [1] : vector<24x512xf32> to vector<24xf32>
      %22 = vector.shape_cast %21 : vector<24xf32> to vector<24x1xf32>
      %23 = arith.addf %19, %22 : vector<24x1xf32>
      %c0_16 = arith.constant 0 : index
      %c0_17 = arith.constant 0 : index
      %24 = vector.load %arg7[%c0_16, %c0_17] : memref<24x1xf32, #tpu.memory_space<vmem>>, vector<24x1xf32>
      tpu.vector_store %arg7[%c0_16, %c0_17], %23 {strides = array<i32>} : memref<24x1xf32, #tpu.memory_space<vmem>>, vector<24x1xf32>,
    } else {
    }
    %c1_i32 = arith.constant 1 : i32
    %11 = arith.cmpi eq, %arg0, %c1_i32 : i32
    %12 = arith.extui %11 : i1 to i32
    %c0_i32_7 = arith.constant 0 : i32
    %13 = arith.cmpi ne, %12, %c0_i32_7 : i32
    scf.if %13 {
      %c0_8 = arith.constant 0 : index
      %c0_9 = arith.constant 0 : index
      %14 = vector.load %arg6[%c0_8, %c0_9] : memref<24x1xf32, #tpu.memory_space<vmem>>, vector<24x1xf32>
      %cst_10 = arith.constant 0.001953125 : f32
      %15 = vector.broadcast %cst_10 : f32 to vector<24x1xf32>
      %16 = arith.mulf %14, %15 : vector<24x1xf32>
      %c0_11 = arith.constant 0 : index
      %c0_12 = arith.constant 0 : index
      %17 = vector.load %arg7[%c0_11, %c0_12] : memref<24x1xf32, #tpu.memory_space<vmem>>, vector<24x1xf32>
      %cst_13 = arith.constant 0.001953125 : f32
      %18 = vector.broadcast %cst_13 : f32 to vector<24x1xf32>
      %19 = arith.mulf %17, %18 : vector<24x1xf32>
      %20 = arith.mulf %16, %16 : vector<24x1xf32>
      %21 = arith.subf %19, %20 : vector<24x1xf32>
      %cst_14 = arith.constant 0.000000e+00 : f32
      %22 = vector.broadcast %cst_14 : f32 to vector<24x1xf32>
      %23 = arith.maximumf %21, %22 : vector<24x1xf32>
      %24 = vector.broadcast %16 : vector<24x1xf32> to vector<24x512xf32>
      %25 = arith.subf %2, %24 : vector<24x512xf32>
      %cst_15 = arith.constant 9.99999974E-6 : f32
      %26 = vector.broadcast %cst_15 : f32 to vector<24x1xf32>
      %27 = arith.addf %23, %26 : vector<24x1xf32>
      %28 = math.rsqrt %27 : vector<24x1xf32>
      %29 = vector.broadcast %28 : vector<24x1xf32> to vector<24x512xf32>
      %30 = arith.mulf %25, %29 : vector<24x512xf32>
      %c0_16 = arith.constant 0 : index
      %c0_17 = arith.constant 0 : index
      %31 = vector.load %arg4[%c0_16, %c0_17] : memref<4x24xf32, #tpu.memory_space<vmem>>, vector<4x24xf32>
      %cst_18 = arith.constant dense<0.000000e+00> : vector<4x512xf32>
      %32 = tpu.matmul %31, %30, %cst_18 {dimension_numbers = #tpu.dot_dimension_numbers<[1], [0], [0], [1], [0, 0, 1, 1], [], []>} : vector<4x24xf32>, vector<24x512xf32>, vector<4x512xf32> -> vector<4x512xf32>
      %c0_19 = arith.constant 0 : index
      %c0_20 = arith.constant 0 : index
      %33 = vector.load %arg5[%c0_19, %c0_20] : memref<4x512xf32, #tpu.memory_space<vmem>>, vector<4x512xf32>
      tpu.vector_store %arg5[%c0_19, %c0_20], %32 {strides = array<i32>} : memref<4x512xf32, #tpu.memory_space<vmem>>, vector<4x512xf32>,
    } else {
    }
    return
  }
  func.func @transform_0(%arg0: i32, %arg1: i32) -> (i32, i32) {
    %c0_i32 = arith.constant 0 : i32
    %c0_i32_0 = arith.constant 0 : i32
    return %c0_i32, %arg1 : i32, i32
  }
  func.func @transform_1(%arg0: i32, %arg1: i32) -> (i32, i32) {
    %c0_i32 = arith.constant 0 : i32
    %c0_i32_0 = arith.constant 0 : i32
    %c0_i32_1 = arith.constant 0 : i32
    return %c0_i32, %c0_i32_0 : i32, i32
  }
  func.func @transform_2(%arg0: i32, %arg1: i32) -> (i32, i32) {
    %c0_i32 = arith.constant 0 : i32
    %c0_i32_0 = arith.constant 0 : i32
    %c0_i32_1 = arith.constant 0 : i32
    return %c0_i32, %c0_i32_0 : i32, i32
  }
  func.func @transform_3(%arg0: i32, %arg1: i32) -> (i32, i32) {
    %0 = arith.muli %arg1, %arg0 : i32
    %c0_i32 = arith.constant 0 : i32
    %c0_i32_0 = arith.constant 0 : i32
    return %c0_i32, %0 : i32, i32
  }
}

module attributes {stable_mosaic.version = 11 : i64} {
  func.func @_avgpool_kernel(%arg0: i32, %arg1: memref<8x18x18xf32, #tpu.memory_space<vmem>>, %arg2: memref<1x16x16xf32, #tpu.memory_space<vmem>>, %arg3: memref<8x16x16xf32, #tpu.memory_space<vmem>>) attributes {dimension_semantics = [#tpu.dimension_semantics<arbitrary>], iteration_bounds = array<i64: 1>, scalar_prefetch = 0 : i64, scratch_operands = 0 : i64, tpu.core_type = #tpu.core_type<tc>, window_params = [{pipeline_mode = #tpu.pipeline_mode<synchronous>, transform_indices = @transform_0, window_bounds = array<i64: 8, 18, 18>}, {pipeline_mode = #tpu.pipeline_mode<synchronous>, transform_indices = @transform_1, window_bounds = array<i64: 1, 16, 16>}, {pipeline_mode = #tpu.pipeline_mode<synchronous>, transform_indices = @transform_2, window_bounds = array<i64: 8, 16, 16>}]} {
    %c0 = arith.constant 0 : index
    %c0_0 = arith.constant 0 : index
    %c0_1 = arith.constant 0 : index
    %0 = vector.load %arg1[%c0, %c0_0, %c0_1] : memref<8x18x18xf32, #tpu.memory_space<vmem>>, vector<8x18x18xf32>
    %1 = vector.extract_strided_slice %0 {offsets = [0, 0, 0], sizes = [8, 18, 16], strides = [1, 1, 1]} : vector<8x18x18xf32> to vector<8x18x16xf32>
    %2 = vector.extract_strided_slice %0 {offsets = [0, 0, 1], sizes = [8, 18, 16], strides = [1, 1, 1]} : vector<8x18x18xf32> to vector<8x18x16xf32>
    %3 = arith.addf %1, %2 : vector<8x18x16xf32>
    %4 = vector.extract_strided_slice %0 {offsets = [0, 0, 2], sizes = [8, 18, 16], strides = [1, 1, 1]} : vector<8x18x18xf32> to vector<8x18x16xf32>
    %5 = arith.addf %3, %4 : vector<8x18x16xf32>
    %6 = vector.extract_strided_slice %5 {offsets = [0, 0, 0], sizes = [8, 16, 16], strides = [1, 1, 1]} : vector<8x18x16xf32> to vector<8x16x16xf32>
    %7 = vector.extract_strided_slice %5 {offsets = [0, 1, 0], sizes = [8, 16, 16], strides = [1, 1, 1]} : vector<8x18x16xf32> to vector<8x16x16xf32>
    %8 = arith.addf %6, %7 : vector<8x16x16xf32>
    %9 = vector.extract_strided_slice %5 {offsets = [0, 2, 0], sizes = [8, 16, 16], strides = [1, 1, 1]} : vector<8x18x16xf32> to vector<8x16x16xf32>
    %10 = arith.addf %8, %9 : vector<8x16x16xf32>
    %c0_2 = arith.constant 0 : index
    %c0_3 = arith.constant 0 : index
    %c0_4 = arith.constant 0 : index
    %11 = vector.load %arg2[%c0_2, %c0_3, %c0_4] : memref<1x16x16xf32, #tpu.memory_space<vmem>>, vector<1x16x16xf32>
    %12 = vector.broadcast %11 : vector<1x16x16xf32> to vector<8x16x16xf32>
    %13 = arith.mulf %10, %12 : vector<8x16x16xf32>
    %c0_5 = arith.constant 0 : index
    %c0_6 = arith.constant 0 : index
    %c0_7 = arith.constant 0 : index
    %14 = vector.load %arg3[%c0_5, %c0_6, %c0_7] : memref<8x16x16xf32, #tpu.memory_space<vmem>>, vector<8x16x16xf32>
    tpu.vector_store %arg3[%c0_5, %c0_6, %c0_7], %13 {strides = array<i32>} : memref<8x16x16xf32, #tpu.memory_space<vmem>>, vector<8x16x16xf32>,
    return
  }
  func.func @transform_0(%arg0: i32) -> (i32, i32, i32) {
    %c0_i32 = arith.constant 0 : i32
    %c0_i32_0 = arith.constant 0 : i32
    %c0_i32_1 = arith.constant 0 : i32
    %c0_i32_2 = arith.constant 0 : i32
    return %c0_i32, %c0_i32_0, %c0_i32_1 : i32, i32, i32
  }
  func.func @transform_1(%arg0: i32) -> (i32, i32, i32) {
    %c0_i32 = arith.constant 0 : i32
    %c0_i32_0 = arith.constant 0 : i32
    %c0_i32_1 = arith.constant 0 : i32
    %c0_i32_2 = arith.constant 0 : i32
    return %c0_i32, %c0_i32_0, %c0_i32_1 : i32, i32, i32
  }
  func.func @transform_2(%arg0: i32) -> (i32, i32, i32) {
    %c0_i32 = arith.constant 0 : i32
    %c0_i32_0 = arith.constant 0 : i32
    %c0_i32_1 = arith.constant 0 : i32
    %c0_i32_2 = arith.constant 0 : i32
    return %c0_i32, %c0_i32_0, %c0_i32_1 : i32, i32, i32
  }
}

</mosaic_0001>

<llo_original>
// kernel: _lambda_.4
$region0: #{_lambda_.4}
  #allocation0 [shape = 'u32[]', space=smem, size = 0x4, offset = 0x4, fixed_abs, tag = 'smem constant byte address 0x4 - core index']
  #allocation1 [shape = 'u32[144,128]{1,0:T(1,128)}', space=vmem, size = 0x12000, scoped, tag = 'internal scratch']
  #allocation2 [shape = 'f32[24,1]{1,0:T(8,128)}', space=vmem, size = 0x3000, scoped, tag = 'scratch operand']
  #allocation3 [shape = 'f32[24,1]{1,0:T(8,128)}', space=vmem, size = 0x3000, scoped, tag = 'scratch operand']
  %s0 = inlined_call_operand.vmem [shape: bf16[36,512], index: 0, kind: input, shape index: {}]
  %s1 = inlined_call_operand.vmem [shape: bf16[24,36], index: 1, kind: input, shape index: {}]
  %s2 = inlined_call_operand.vmem [shape: f32[4,24], index: 2, kind: input, shape index: {}]
  %s3 = inlined_call_operand.vmem [shape: f32[4,512], index: 3, kind: output, shape index: {}]
  %s4 = sld [smem:[#allocation0]]
  $region57: #{_lambda_.4} parent=0
    _
  %s6 = ssub.s32 1, %s4
  %s7 = scalar_select 0, %s6, %s4
  loop: start=0, step=1, limit=4
  $region2: #{_lambda_.4} parent=0 // loop_pre_header
    _
  $region3: #{_lambda_.4} parent=0 // loop_header
    %s9 = sphi 0, %s13
    %p10 = scmp.ge.s32.totalorder %s9, 4
    %s16 = sphi 0, %s28
    %s17 = sphi 0, %s24
    %s18 = sphi 0, %s16
    %s19 = sphi 0, %s17
    %s20 = sphi 0, %s18
    %s21 = sphi 0, %s19
    %s31 = sphi 0, %s33
    %s34 = sphi 0, %s31
    %s35 = sphi 0, %s34
    %s51 = sphi 0, %s35
    %s55 = sphi 0, %s55
    %s57 = sphi 0, %s55
    %s58 = sphi 0, %s57
    %s72 = sphi 0, %s58
    %s76 = sphi 0, %s76
    %s78 = sphi 0, %s76
    %s79 = sphi 0, %s78
    %s93 = sphi 0, %s79
    %s101 = sphi 0, %s103
    %s104 = sphi 0, %s101
    %s105 = sphi 0, %s104
    %s121 = sphi 0, %s105
  $region4: #{_lambda_.4} parent=0 // loop_header_branch
    %12 = sbr.rel (%p10) target = $region8
  $region5: #{_lambda_.4} parent=0 // loop_body
    %s14 = ssub.s32 %s9, 1
    %s15 = ssub.s32 %s9, 2
    %s22 = sadd.s32 1, %s17
    %p23 = scmp.ge.s32.totalorder %s22, 1
    %s24 = scalar_select %p23, 0, %s22
    %s25 = sadd.s32 1, %s16
    %s26 = scalar_select %p23, %s25, %s16
    %p27 = scmp.ge.s32.totalorder %s26, 2
    %s28 = scalar_select %p27, 0, %s26
    %s29 = ssub.s32 %s17, %s24
    %p30 = scmp.eq.s32.totalorder %s29, 0
    %s32 = sadd.s32 %s31, 1
    %s33 = scalar_select %p30, %s31, %s32
    %p36 = pneg %p30
    %p37 = scmp.eq.s32.totalorder %s9, 1
    %p38 = por %p36, %p37
    %p39 = scmp.ne.s32.totalorder %s31, %s34
    %p40 = scmp.eq.s32.totalorder %s9, 0
    %p41 = por %p39, %p40
    %p42 = scmp.ne.s32.totalorder %s31, %s34
    %p43 = scmp.eq.s32.totalorder %s14, 1
    %p44 = por %p42, %p43
    %p45 = scmp.ne.s32.totalorder %s34, %s35
    %p46 = scmp.eq.s32.totalorder %s14, 0
    %p47 = por %p45, %p46
    %p48 = scmp.ne.s32.totalorder %s34, %s35
    %p49 = scmp.eq.s32.totalorder %s15, 1
    %p50 = por %p48, %p49
    %p52 = scmp.ne.s32.totalorder %s35, %s51
    %p53 = scmp.eq.s32.totalorder %s15, 0
    %p54 = por %p52, %p53
    %s56 = sadd.s32 %s55, 1
    %p59 = scmp.eq.s32.totalorder %s9, 1
    %p60 = scmp.ne.s32.totalorder %s55, %s57
    %p61 = scmp.eq.s32.totalorder %s9, 0
    %p62 = por %p60, %p61
    %p63 = scmp.ne.s32.totalorder %s55, %s57
    %p64 = scmp.eq.s32.totalorder %s14, 1
    %p65 = por %p63, %p64
    %p66 = scmp.ne.s32.totalorder %s57, %s58
    %p67 = scmp.eq.s32.totalorder %s14, 0
    %p68 = por %p66, %p67
    %p69 = scmp.ne.s32.totalorder %s57, %s58
    %p70 = scmp.eq.s32.totalorder %s15, 1
    %p71 = por %p69, %p70
    %p73 = scmp.ne.s32.totalorder %s58, %s72
    %p74 = scmp.eq.s32.totalorder %s15, 0
    %p75 = por %p73, %p74
    %s77 = sadd.s32 %s76, 1
    %p80 = scmp.eq.s32.totalorder %s9, 1
    %p81 = scmp.ne.s32.totalorder %s76, %s78
    %p82 = scmp.eq.s32.totalorder %s9, 0
    %p83 = por %p81, %p82
    %p84 = scmp.ne.s32.totalorder %s76, %s78
    %p85 = scmp.eq.s32.totalorder %s14, 1
    %p86 = por %p84, %p85
    %p87 = scmp.ne.s32.totalorder %s78, %s79
    %p88 = scmp.eq.s32.totalorder %s14, 0
    %p89 = por %p87, %p88
    %p90 = scmp.ne.s32.totalorder %s78, %s79
    %p91 = scmp.eq.s32.totalorder %s15, 1
    %p92 = por %p90, %p91
    %p94 = scmp.ne.s32.totalorder %s79, %s93
    %p95 = scmp.eq.s32.totalorder %s15, 0
    %p96 = por %p94, %p95
    %s97 = smul.u32 %s17, %s16
    %s98 = smul.u32 %s24, %s28
    %s99 = ssub.s32 %s97, %s98
    %p100 = scmp.eq.s32.totalorder %s99, 0
    %s102 = sadd.s32 %s101, 1
    %s103 = scalar_select %p100, %s101, %s102
    %p106 = pneg %p100
    %p107 = scmp.eq.s32.totalorder %s9, 1
    %p108 = por %p106, %p107
    %p109 = scmp.ne.s32.totalorder %s101, %s104
    %p110 = scmp.eq.s32.totalorder %s9, 0
    %p111 = por %p109, %p110
    %p112 = scmp.ne.s32.totalorder %s101, %s104
    %p113 = scmp.eq.s32.totalorder %s14, 1
    %p114 = por %p112, %p113
    %p115 = scmp.ne.s32.totalorder %s104, %s105
    %p116 = scmp.eq.s32.totalorder %s14, 0
    %p117 = por %p115, %p116
    %p118 = scmp.ne.s32.totalorder %s104, %s105
    %p119 = scmp.eq.s32.totalorder %s15, 1
    %p120 = por %p118, %p119
    %p122 = scmp.ne.s32.totalorder %s105, %s121
    %p123 = scmp.eq.s32.totalorder %s15, 0
    %p124 = por %p122, %p123
    %p125 = scmp.le.s32.totalorder 1, %s9
    %p126 = scmp.lt.s32.totalorder %s9, 3
    %p127 = pnand %p125, %p126
    %p128 = pneg %p127
    // Predicated region
    $region9: #{_lambda_.4} parent=5 // pred_check
      _
    $region10: #{_lambda_.4} parent=5 // pred_check_branch
      %130 = sbr.rel (%p127) target = $region12
    $region11: #{_lambda_.4} parent=5 // pred_region
      %s131 = ssub.s32 %s9, 1
      // Predicated region
      $region13: #{_lambda_.4} parent=11 // pred_check
        %p132 = pneg %p47
      $region14: #{_lambda_.4} parent=11 // pred_check_branch
        %134 = sbr.rel (%p132) target = $region16
      $region15: #{_lambda_.4} parent=11 // pred_region
        %s135 = smul.u32 4, %s19
        %p136 = scmp.lt.s32.totalorder %s135, 3
        %s137 = scalar_select %p136, %s135, 3
        %s138 = smul.addr %s137, 4
        %s139 = scalar_lea.vmem %s0, %s138
        %s140 = smul.u32 4, %s19
      $region16: #{_lambda_.4} parent=11 // pred_fallthru
        _
      // Predicated region
      $region17: #{_lambda_.4} parent=11 // pred_check
        %p141 = pneg %p68
      $region18: #{_lambda_.4} parent=11 // pred_check_branch
        %143 = sbr.rel (%p141) target = $region20
      $region19: #{_lambda_.4} parent=11 // pred_region
        _
      $region20: #{_lambda_.4} parent=11 // pred_fallthru
        _
      // Predicated region
      $region21: #{_lambda_.4} parent=11 // pred_check
        %p144 = pneg %p89
      $region22: #{_lambda_.4} parent=11 // pred_check_branch
        %146 = sbr.rel (%p144) target = $region24
      $region23: #{_lambda_.4} parent=11 // pred_region
        _
      $region24: #{_lambda_.4} parent=11 // pred_fallthru
        _
    $region12: #{_lambda_.4} parent=5 // pred_fallthru
      _
    %p147 = scmp.lt.s32.totalorder %s9, 2
    // Predicated region
    $region25: #{_lambda_.4} parent=5 // pred_check
      %p148 = pneg %p147
    $region26: #{_lambda_.4} parent=5 // pred_check_branch
      %150 = sbr.rel (%p148) target = $region28
    $region27: #{_lambda_.4} parent=5 // pred_region
      _
    $region28: #{_lambda_.4} parent=5 // pred_fallthru
      _
    %p151 = scmp.le.s32.totalorder 1, %s9
    %p152 = scmp.lt.s32.totalorder %s9, 3
    %p153 = pnand %p151, %p152
    %p154 = pneg %p153
    // Predicated region
    $region29: #{_lambda_.4} parent=5 // pred_check
      _
    $region30: #{_lambda_.4} parent=5 // pred_check_branch
      %156 = sbr.rel (%p153) target = $region32
    $region31: #{_lambda_.4} parent=5 // pred_region
      %s157 = ssub.s32 %s9, 1
      %s158 = smul.u32 4, %s19
      %p159 = scmp.lt.s32.totalorder %s158, 3
      %s160 = scalar_select %p159, %s158, 3
      %s161 = smul.addr %s160, 4
      %s162 = scalar_lea.vmem %s0, %s161
      %p163 = pneg %p47
      %p164 = pneg %p44
      %p165 = pneg %p68
      %p166 = pneg %p65
      %p167 = pneg %p89
      %p168 = pneg %p86
      %p169 = pneg %p117
      %p170 = pneg %p114
      %s171 = smul.u32 %s19, %s18
      %s172 = smul.u32 4, %s171
      %p173 = scmp.lt.s32.totalorder %s172, 3
      %s174 = scalar_select %p173, %s172, 3
      %s175 = smul.addr %s174, 4
      %s176 = scalar_lea.vmem %s3, %s175
      %s177 = smul.u32 4, %s19
      %p178 = scmp.lt.s32.totalorder %s177, 3
      %s179 = scalar_select %p178, %s177, 3
      %s180 = smul.addr %s179, 4
      %s181 = scalar_lea.vmem %s0, %s180
      %s182 = smul.u32 4, %s19
      %s183 = smul.u32 %s19, %s18
      %s184 = smul.u32 4, %s183
      %p185 = scmp.lt.s32.totalorder %s184, 3
      %s186 = scalar_select %p185, %s184, 3
      %s187 = smul.addr %s186, 4
      %s188 = scalar_lea.vmem %s3, %s187
      %s189 = smul.u32 %s19, %s18
      %s190 = smul.u32 4, %s189
      %v192 = vld [vmem:[%s1] sm:$0xf]
      %v193 = vld [vmem:[%s1 + $0x4] sm:$0xf]
      %v194 = vld [vmem:[%s1 + $0x8] sm:$0xf]
      %v195 = vld [vmem:[%s181] sm:$0xff]
      %v196 = vld [vmem:[%s181 + $0x8] sm:$0xff]
      %v197 = vld [vmem:[%s181 + $0x10] sm:$0xff]
      %v198 = vld [vmem:[%s181 + $0x18] sm:$0xff]
      %v199 = vld [vmem:[%s181 + $0x20] sm:$0xff]
      %v200 = vld [vmem:[%s181 + $0x28] sm:$0xff]
      %v201 = vld [vmem:[%s181 + $0x30] sm:$0xff]
      %v202 = vld [vmem:[%s181 + $0x38] sm:$0xff]
      %v203 = vld [vmem:[%s181 + $0x40] sm:$0x33]
      %v204 = vld [vmem:[%s181 + $0x48] sm:$0x33]
      %v208 = vunpack.c.l.b16 %v192
      %v209 = vunpack.c.l.b16 %v193
      %v210 = vunpack.c.l.b16 %v194
      %v211 = vpack.c.b16 %v209, %v208
      %v212 = vpack.c.b16 %v210, %v210
      %v223 = vunpack.c.l.b16 %v195
      %v224 = vunpack.c.h.b16 %v195
      %v225 = vunpack.c.l.b16 %v196
      %v226 = vunpack.c.h.b16 %v196
      %v227 = vunpack.c.l.b16 %v197
      %v228 = vunpack.c.h.b16 %v197
      %v229 = vunpack.c.l.b16 %v198
      %v230 = vunpack.c.h.b16 %v198
      %v231 = vunpack.c.l.b16 %v199
      %v232 = vunpack.c.h.b16 %v199
      %v233 = vunpack.c.l.b16 %v200
      %v234 = vunpack.c.h.b16 %v200
      %v235 = vunpack.c.l.b16 %v201
      %v236 = vunpack.c.h.b16 %v201
      %v237 = vunpack.c.l.b16 %v202
      %v238 = vunpack.c.h.b16 %v202
      %v239 = vunpack.c.l.b16 %v203
      %v240 = vunpack.c.h.b16 %v203
      %v241 = vunpack.c.l.b16 %v204
      %v242 = vunpack.c.h.b16 %v204
      %v243 = vpack.c.b16 %v227, %v223
      %v244 = vpack.c.b16 %v228, %v224
      %v245 = vpack.c.b16 %v229, %v225
      %v246 = vpack.c.b16 %v230, %v226
      %v247 = vpack.c.b16 %v235, %v231
      %v248 = vpack.c.b16 %v236, %v232
      %v249 = vpack.c.b16 %v237, %v233
      %v250 = vpack.c.b16 %v238, %v234
      %v251 = vpack.c.b16 %v239, %v239
      %v252 = vpack.c.b16 %v240, %v240
      %v253 = vpack.c.b16 %v241, %v241
      %v254 = vpack.c.b16 %v242, %v242
      %vm263 = vcmask 293888
      %v265 = vsel %vm263, %v211, 0
      %v268 = vsel %vm263, %v212, 0
      %vm270 = vcmask 1041408
      %v272 = vsel %vm270, %v251, 0
      %v275 = vsel %vm270, %v252, 0
      %v278 = vsel %vm270, %v253, 0
      %v281 = vsel %vm270, %v254, 0
      %283 = vmatprep.subr.bf16.mxu0 %v244
      %284 = vmatpush1.bf16.msra.mxu0 %v243
      %285 = vmatprep.subr.bf16.mxu0 %v248
      %286 = vmatpush1.bf16.msra.mxu0 %v247
      %287 = vmatprep.subr.bf16.mxu0 %v275
      %288 = vmatpush1.bf16.msra.mxu0 %v272
      %289 = vmatprep.subr.bf16.mxu0 0
      %290 = vmatpush1.bf16.msra.mxu0 0
      %291 = vmatprep.subr.bf16.mxu0 0
      %292 = vmatpush1.bf16.msra.mxu0 0
      %293 = vmatprep.subr.bf16.mxu0 0
      %294 = vmatpush1.bf16.msra.mxu0 0
      %295 = vmatprep.subr.bf16.mxu0 0
      %296 = vmatpush1.bf16.msra.mxu0 0
      %297 = vmatprep.subr.bf16.mxu0 0
      %298 = vmatpush1.bf16.msra.mxu0 0
      %299 = vmatprep.subr.bf16.mxu0 0
      %300 = vmatpush1.bf16.msra.mxu0 0
      %301 = vmatprep.subr.bf16.mxu0 0
      %302 = vmatpush1.bf16.msra.mxu0 0
      %303 = vmatprep.subr.bf16.mxu0 0
      %304 = vmatpush1.bf16.msra.mxu0 0
      %305 = vmatprep.subr.bf16.mxu0 0
      %306 = vmatpush1.bf16.msra.mxu0 0
      %307 = vmatprep.subr.bf16.mxu0 0
      %308 = vmatpush1.bf16.msra.mxu0 0
      %309 = vmatprep.subr.bf16.mxu0 0
      %310 = vmatpush1.bf16.msra.mxu0 0
      %311 = vmatprep.subr.bf16.mxu0 0
      %312 = vmatpush1.bf16.msra.mxu0 0
      %313 = vmatprep.subr.bf16.mxu0 0
      %314 = vmatpush1.bf16.msra.mxu0 0
      %315 = vmatprep.mubr.bf16.mxu0 0
      %316 = vmatmul.mubr.bf16.gmra.mrb[0].mxu0 %v265
      %v317 = vpop.f32.mrb[0].mxu0
      %v318 = vadd.f32 0.0, %v317
      %v319 = vpop.f32.mrb[0].mxu0
      %v320 = vadd.f32 0.0, %v319
      %v321 = vpop.f32.mrb[0].mxu0
      %v322 = vadd.f32 0.0, %v321
      %v323 = vpop.f32.mrb[0].mxu0
      %v324 = vadd.f32 0.0, %v323
      %325 = vmatprep.mubr.bf16.mxu0 0
      %326 = vmatmul.mubr.bf16.gmra.mrb[0].mxu0 %v268
      %v327 = vpop.f32.mrb[0].mxu0
      %v328 = vadd.f32 0.0, %v327
      %v329 = vpop.f32.mrb[0].mxu0
      %v330 = vadd.f32 0.0, %v329
      %v331 = vpop.f32.mrb[0].mxu0
      %v332 = vpop.f32.mrb[0].mxu0
      %333 = vdwg.mxu0
      %334 = vmatprep.subr.bf16.mxu0 %v246
      %335 = vmatpush1.bf16.msra.mxu0 %v245
      %336 = vmatprep.subr.bf16.mxu0 %v250
      %337 = vmatpush1.bf16.msra.mxu0 %v249
      %338 = vmatprep.subr.bf16.mxu0 %v281
      %339 = vmatpush1.bf16.msra.mxu0 %v278
      %340 = vmatprep.subr.bf16.mxu0 0
      %341 = vmatpush1.bf16.msra.mxu0 0
      %342 = vmatprep.subr.bf16.mxu0 0
      %343 = vmatpush1.bf16.msra.mxu0 0
      %344 = vmatprep.subr.bf16.mxu0 0
      %345 = vmatpush1.bf16.msra.mxu0 0
      %346 = vmatprep.subr.bf16.mxu0 0
      %347 = vmatpush1.bf16.msra.mxu0 0
      %348 = vmatprep.subr.bf16.mxu0 0
      %349 = vmatpush1.bf16.msra.mxu0 0
      %350 = vmatprep.subr.bf16.mxu0 0
      %351 = vmatpush1.bf16.msra.mxu0 0
      %352 = vmatprep.subr.bf16.mxu0 0
      %353 = vmatpush1.bf16.msra.mxu0 0
      %354 = vmatprep.subr.bf16.mxu0 0
      %355 = vmatpush1.bf16.msra.mxu0 0
      %356 = vmatprep.subr.bf16.mxu0 0
      %357 = vmatpush1.bf16.msra.mxu0 0
      %358 = vmatprep.subr.bf16.mxu0 0
      %359 = vmatpush1.bf16.msra.mxu0 0
      %360 = vmatprep.subr.bf16.mxu0 0
      %361 = vmatpush1.bf16.msra.mxu0 0
      %362 = vmatprep.subr.bf16.mxu0 0
      %363 = vmatpush1.bf16.msra.mxu0 0
      %364 = vmatprep.subr.bf16.mxu0 0
      %365 = vmatpush1.bf16.msra.mxu0 0
      %366 = vmatprep.mubr.bf16.mxu0 0
      %367 = vmatmul.mubr.bf16.gmra.mrb[0].mxu0 %v265
      %v368 = vpop.f32.mrb[0].mxu0
      %v369 = vadd.f32 0.0, %v368
      %v370 = vpop.f32.mrb[0].mxu0
      %v371 = vadd.f32 0.0, %v370
      %v372 = vpop.f32.mrb[0].mxu0
      %v373 = vadd.f32 0.0, %v372
      %v374 = vpop.f32.mrb[0].mxu0
      %v375 = vadd.f32 0.0, %v374
      %376 = vmatprep.mubr.bf16.mxu0 0
      %377 = vmatmul.mubr.bf16.gmra.mrb[0].mxu0 %v268
      %v378 = vpop.f32.mrb[0].mxu0
      %v379 = vadd.f32 0.0, %v378
      %v380 = vpop.f32.mrb[0].mxu0
      %v381 = vadd.f32 0.0, %v380
      %v382 = vpop.f32.mrb[0].mxu0
      %v383 = vpop.f32.mrb[0].mxu0
      %384 = vdwg.mxu0
      %p385 = scmp.eq.s32.totalorder %s18, 0
      %p386 = scmp.eq.s32.totalorder %s19, 0
      %p387 = pnand %p385, %p386
      %p388 = pneg %p387
      // Predicated region
      $region33: #{_lambda_.4} parent=31 // pred_check
        _
      $region34: #{_lambda_.4} parent=31 // pred_check_branch
        %390 = sbr.rel (%p387) target = $region36
      $region35: #{_lambda_.4} parent=31 // pred_region
        %vm391 = vcmask 7168
        %392 = vst.msk [vmem:[#allocation2] sm:$0xff] %vm391, 0.0
        %393 = vst.msk [vmem:[#allocation2 + $0x8] sm:$0xff] %vm391, 0.0
        %394 = vst.msk [vmem:[#allocation2 + $0x10] sm:$0xff] %vm391, 0.0
        %395 = vst.msk [vmem:[#allocation3] sm:$0xff] %vm391, 0.0
        %396 = vst.msk [vmem:[#allocation3 + $0x8] sm:$0xff] %vm391, 0.0
        %397 = vst.msk [vmem:[#allocation3 + $0x10] sm:$0xff] %vm391, 0.0
      $region36: #{_lambda_.4} parent=31 // pred_fallthru
        _
      // Predicated region
      $region37: #{_lambda_.4} parent=31 // pred_check
        %p398 = pneg %p385
      $region38: #{_lambda_.4} parent=31 // pred_check_branch
        %400 = sbr.rel (%p398) target = $region40
      $region39: #{_lambda_.4} parent=31 // pred_region
        %v401 = vld [vmem:[#allocation2] sm:$0xff]
        %v402 = vld [vmem:[#allocation2 + $0x8] sm:$0xff]
        %v403 = vld [vmem:[#allocation2 + $0x10] sm:$0xff]
        %v404 = vadd.f32 %v318, %v320
        %v405 = vadd.f32 %v404, %v369
        %v406 = vadd.f32 %v405, %v371
        %407 = vadd.xlane.f32.xlu0 %v406
        %v408 = vpop.xlane.xlu0 %407
        %v409 = vadd.f32 %v322, %v324
        %v410 = vadd.f32 %v409, %v373
        %v411 = vadd.f32 %v410, %v375
        %412 = vadd.xlane.f32.xlu0 %v411
        %v413 = vpop.xlane.xlu0 %412
        %v414 = vadd.f32 %v328, %v330
        %v415 = vadd.f32 %v414, %v379
        %v416 = vadd.f32 %v415, %v381
        %417 = vadd.xlane.f32.xlu0 %v416
        %v418 = vpop.xlane.xlu0 %417
        %v419 = vadd.f32 %v401, %v408
        %v420 = vadd.f32 %v402, %v413
        %v421 = vadd.f32 %v403, %v418
        %vm422 = vcmask 7168
        %423 = vst.msk [vmem:[#allocation2] sm:$0xff] %vm422, %v419
        %424 = vst.msk [vmem:[#allocation2 + $0x8] sm:$0xff] %vm422, %v420
        %425 = vst.msk [vmem:[#allocation2 + $0x10] sm:$0xff] %vm422, %v421
        %v426 = vld [vmem:[#allocation3] sm:$0xff]
        %v427 = vld [vmem:[#allocation3 + $0x8] sm:$0xff]
        %v428 = vld [vmem:[#allocation3 + $0x10] sm:$0xff]
        %v429 = vmul.f32 %v318, %v318
        %v430 = vmul.f32 %v320, %v320
        %v431 = vmul.f32 %v369, %v369
        %v432 = vmul.f32 %v371, %v371
        %v433 = vmul.f32 %v322, %v322
        %v434 = vmul.f32 %v324, %v324
        %v435 = vmul.f32 %v373, %v373
        %v436 = vmul.f32 %v375, %v375
        %v437 = vmul.f32 %v328, %v328
        %v438 = vmul.f32 %v330, %v330
        %v439 = vmul.f32 %v379, %v379
        %v440 = vmul.f32 %v381, %v381
        %v441 = vadd.f32 %v429, %v430
        %v442 = vadd.f32 %v441, %v431
        %v443 = vadd.f32 %v442, %v432
        %444 = vadd.xlane.f32.xlu0 %v443
        %v445 = vpop.xlane.xlu0 %444
        %v446 = vadd.f32 %v433, %v434
        %v447 = vadd.f32 %v446, %v435
        %v448 = vadd.f32 %v447, %v436
        %449 = vadd.xlane.f32.xlu0 %v448
        %v450 = vpop.xlane.xlu0 %449
        %v451 = vadd.f32 %v437, %v438
        %v452 = vadd.f32 %v451, %v439
        %v453 = vadd.f32 %v452, %v440
        %454 = vadd.xlane.f32.xlu0 %v453
        %v455 = vpop.xlane.xlu0 %454
        %v456 = vadd.f32 %v426, %v445
        %v457 = vadd.f32 %v427, %v450
        %v458 = vadd.f32 %v428, %v455
        %459 = vst.msk [vmem:[#allocation3] sm:$0xff] %vm422, %v456
        %460 = vst.msk [vmem:[#allocation3 + $0x8] sm:$0xff] %vm422, %v457
        %461 = vst.msk [vmem:[#allocation3 + $0x10] sm:$0xff] %vm422, %v458
      $region40: #{_lambda_.4} parent=31 // pred_fallthru
        _
      %p462 = scmp.eq.s32.totalorder %s18, 1
      // Predicated region
      $region41: #{_lambda_.4} parent=31 // pred_check
        %p463 = pneg %p462
      $region42: #{_lambda_.4} parent=31 // pred_check_branch
        %465 = sbr.rel (%p463) target = $region44
      $region43: #{_lambda_.4} parent=31 // pred_region
        %v466 = vld [vmem:[#allocation2] sm:$0xff]
        %v467 = vld [vmem:[#allocation2 + $0x8] sm:$0xff]
        %v468 = vld [vmem:[#allocation2 + $0x10] sm:$0xff]
        %v469 = vmul.f32 %v466, 0.001953125
        %v470 = vmul.f32 %v467, 0.001953125
        %v471 = vmul.f32 %v468, 0.001953125
        %v472 = vld [vmem:[#allocation3] sm:$0xff]
        %v473 = vld [vmem:[#allocation3 + $0x8] sm:$0xff]
        %v474 = vld [vmem:[#allocation3 + $0x10] sm:$0xff]
        %v475 = vmul.f32 %v472, 0.001953125
        %v476 = vmul.f32 %v473, 0.001953125
        %v477 = vmul.f32 %v474, 0.001953125
        %v478 = vmul.f32 %v469, %v469
        %v479 = vmul.f32 %v470, %v470
        %v480 = vmul.f32 %v471, %v471
        %v481 = vsub.f32 %v475, %v478
        %v482 = vsub.f32 %v476, %v479
        %v483 = vsub.f32 %v477, %v480
        %v484 = vmax.f32 %v481, 0.0
        %v485 = vmax.f32 %v482, 0.0
        %v486 = vmax.f32 %v483, 0.0
        %488 = vset.pattern.permute.xlu0 0
        %489 = vperm.xlu0 %488, %v469
        %v490 = vpop.permute.xlu0 %489
        %493 = vset.pattern.permute.xlu0 0
        %494 = vperm.xlu0 %493, %v470
        %v495 = vpop.permute.xlu0 %494
        %498 = vset.pattern.permute.xlu0 0
        %499 = vperm.xlu0 %498, %v471
        %v500 = vpop.permute.xlu0 %499
        %v502 = vsub.f32 %v318, %v490
        %v503 = vsub.f32 %v320, %v490
        %v504 = vsub.f32 %v369, %v490
        %v505 = vsub.f32 %v371, %v490
        %v506 = vsub.f32 %v322, %v495
        %v507 = vsub.f32 %v324, %v495
        %v508 = vsub.f32 %v373, %v495
        %v509 = vsub.f32 %v375, %v495
        %v510 = vsub.f32 %v328, %v500
        %v511 = vsub.f32 %v330, %v500
        %v512 = vsub.f32 %v379, %v500
        %v513 = vsub.f32 %v381, %v500
        %v514 = vadd.f32 %v484, 1e-05
        %v515 = vadd.f32 %v485, 1e-05
        %v516 = vadd.f32 %v486, 1e-05
        %v517 = vrsqrt.pop %v514
        %v518 = vrsqrt.pop %v515
        %v519 = vrsqrt.pop %v516
        %521 = vset.pattern.permute.xlu0 0
        %522 = vperm.xlu0 %521, %v517
        %v523 = vpop.permute.xlu0 %522
        %526 = vset.pattern.permute.xlu0 0
        %527 = vperm.xlu0 %526, %v518
        %v528 = vpop.permute.xlu0 %527
        %531 = vset.pattern.permute.xlu0 0
        %532 = vperm.xlu0 %531, %v519
        %v533 = vpop.permute.xlu0 %532
        %v535 = vmul.f32 %v502, %v523
        %v536 = vmul.f32 %v503, %v523
        %v537 = vmul.f32 %v504, %v523
        %v538 = vmul.f32 %v505, %v523
        %v539 = vmul.f32 %v506, %v528
        %v540 = vmul.f32 %v507, %v528
        %v541 = vmul.f32 %v508, %v528
        %v542 = vmul.f32 %v509, %v528
        %v543 = vmul.f32 %v510, %v533
        %v544 = vmul.f32 %v511, %v533
        %v545 = vmul.f32 %v512, %v533
        %v546 = vmul.f32 %v513, %v533
        %v547 = vld [vmem:[%s2] sm:$0xf]
        %vm548 = vcmask 195584
        %v550 = vsel %vm548, %v547, 0
        %552 = vmatprep.subr.mxu0 %v536
        %553 = vmatpush1.msra.mxu0 %v535
        %554 = vmatprep.subr.mxu0 %v540
        %555 = vmatpush1.msra.mxu0 %v539
        %556 = vmatprep.subr.mxu0 %v544
        %557 = vmatpush1.msra.mxu0 %v543
        %558 = vmatprep.subr.mxu0 0.0
        %559 = vmatpush1.msra.mxu0 0.0
        %560 = vmatprep.subr.mxu0 0.0
        %561 = vmatpush1.msra.mxu0 0.0
        %562 = vmatprep.subr.mxu0 0.0
        %563 = vmatpush1.msra.mxu0 0.0
        %564 = vmatprep.subr.mxu0 0.0
        %565 = vmatpush1.msra.mxu0 0.0
        %566 = vmatprep.subr.mxu0 0.0
        %567 = vmatpush1.msra.mxu0 0.0
        %568 = vmatprep.subr.mxu0 0.0
        %569 = vmatpush1.msra.mxu0 0.0
        %570 = vmatprep.subr.mxu0 0.0
        %571 = vmatpush1.msra.mxu0 0.0
        %572 = vmatprep.subr.mxu0 0.0
        %573 = vmatpush1.msra.mxu0 0.0
        %574 = vmatprep.subr.mxu0 0.0
        %575 = vmatpush1.msra.mxu0 0.0
        %576 = vmatprep.subr.mxu0 0.0
        %577 = vmatpush1.msra.mxu0 0.0
        %578 = vmatprep.subr.mxu0 0.0
        %579 = vmatpush1.msra.mxu0 0.0
        %580 = vmatprep.subr.mxu0 0.0
        %581 = vmatpush1.msra.mxu0 0.0
        %582 = vmatprep.subr.mxu0 0.0
        %583 = vmatpush1.msra.mxu0 0.0
        %584 = vmatprep.subr.mxu0 0.0
        %585 = vmatpush1.msra.mxu0 0.0
        %586 = vmatprep.subr.mxu0 0.0
        %587 = vmatpush1.msra.mxu0 0.0
        %588 = vmatprep.subr.mxu0 0.0
        %589 = vmatpush1.msra.mxu0 0.0
        %590 = vmatprep.subr.mxu0 0.0
        %591 = vmatpush1.msra.mxu0 0.0
        %592 = vmatprep.subr.mxu0 0.0
        %593 = vmatpush1.msra.mxu0 0.0
        %594 = vmatprep.subr.mxu0 0.0
        %595 = vmatpush1.msra.mxu0 0.0
        %596 = vmatprep.subr.mxu0 0.0
        %597 = vmatpush1.msra.mxu0 0.0
        %598 = vmatprep.subr.mxu0 0.0
        %599 = vmatpush1.msra.mxu0 0.0
        %600 = vmatprep.subr.mxu0 0.0
        %601 = vmatpush1.msra.mxu0 0.0
        %602 = vmatprep.subr.mxu0 0.0
        %603 = vmatpush1.msra.mxu0 0.0
        %604 = vmatprep.subr.mxu0 0.0
        %605 = vmatpush1.msra.mxu0 0.0
        %606 = vmatprep.subr.mxu0 0.0
        %607 = vmatpush1.msra.mxu0 0.0
        %608 = vmatprep.subr.mxu0 0.0
        %609 = vmatpush1.msra.mxu0 0.0
        %610 = vmatprep.subr.mxu0 0.0
        %611 = vmatpush1.msra.mxu0 0.0
        %612 = vmatprep.subr.mxu0 0.0
        %613 = vmatpush1.msra.mxu0 0.0
        %614 = vmatprep.subr.mxu0 0.0
        %615 = vmatpush1.msra.mxu0 0.0
        %616 = vmatprep.mubr.f32.mxu0 0.0
        %617 = vmatmul.mubr.f32.gmra.mrb[0].mxu0 %v550
        %v618 = vpop.f32.mrb[0].mxu0
        %v619 = vadd.f32 0.0, %v618
        %v620 = vpop.f32.mrb[0].mxu0
        %v621 = vadd.f32 0.0, %v620
        %622 = vdwg.mxu0
        %623 = vmatprep.subr.mxu0 %v538
        %624 = vmatpush1.msra.mxu0 %v537
        %625 = vmatprep.subr.mxu0 %v542
        %626 = vmatpush1.msra.mxu0 %v541
        %627 = vmatprep.subr.mxu0 %v546
        %628 = vmatpush1.msra.mxu0 %v545
        %629 = vmatprep.subr.mxu0 0.0
        %630 = vmatpush1.msra.mxu0 0.0
        %631 = vmatprep.subr.mxu0 0.0
        %632 = vmatpush1.msra.mxu0 0.0
        %633 = vmatprep.subr.mxu0 0.0
        %634 = vmatpush1.msra.mxu0 0.0
        %635 = vmatprep.subr.mxu0 0.0
        %636 = vmatpush1.msra.mxu0 0.0
        %637 = vmatprep.subr.mxu0 0.0
        %638 = vmatpush1.msra.mxu0 0.0
        %639 = vmatprep.subr.mxu0 0.0
        %640 = vmatpush1.msra.mxu0 0.0
        %641 = vmatprep.subr.mxu0 0.0
        %642 = vmatpush1.msra.mxu0 0.0
        %643 = vmatprep.subr.mxu0 0.0
        %644 = vmatpush1.msra.mxu0 0.0
        %645 = vmatprep.subr.mxu0 0.0
        %646 = vmatpush1.msra.mxu0 0.0
        %647 = vmatprep.subr.mxu0 0.0
        %648 = vmatpush1.msra.mxu0 0.0
        %649 = vmatprep.subr.mxu0 0.0
        %650 = vmatpush1.msra.mxu0 0.0
        %651 = vmatprep.subr.mxu0 0.0
        %652 = vmatpush1.msra.mxu0 0.0
        %653 = vmatprep.subr.mxu0 0.0
        %654 = vmatpush1.msra.mxu0 0.0
        %655 = vmatprep.subr.mxu0 0.0
        %656 = vmatpush1.msra.mxu0 0.0
        %657 = vmatprep.subr.mxu0 0.0
        %658 = vmatpush1.msra.mxu0 0.0
        %659 = vmatprep.subr.mxu0 0.0
        %660 = vmatpush1.msra.mxu0 0.0
        %661 = vmatprep.subr.mxu0 0.0
        %662 = vmatpush1.msra.mxu0 0.0
        %663 = vmatprep.subr.mxu0 0.0
        %664 = vmatpush1.msra.mxu0 0.0
        %665 = vmatprep.subr.mxu0 0.0
        %666 = vmatpush1.msra.mxu0 0.0
        %667 = vmatprep.subr.mxu0 0.0
        %668 = vmatpush1.msra.mxu0 0.0
        %669 = vmatprep.subr.mxu0 0.0
        %670 = vmatpush1.msra.mxu0 0.0
        %671 = vmatprep.subr.mxu0 0.0
        %672 = vmatpush1.msra.mxu0 0.0
        %673 = vmatprep.subr.mxu0 0.0
        %674 = vmatpush1.msra.mxu0 0.0
        %675 = vmatprep.subr.mxu0 0.0
        %676 = vmatpush1.msra.mxu0 0.0
        %677 = vmatprep.subr.mxu0 0.0
        %678 = vmatpush1.msra.mxu0 0.0
        %679 = vmatprep.subr.mxu0 0.0
        %680 = vmatpush1.msra.mxu0 0.0
        %681 = vmatprep.subr.mxu0 0.0
        %682 = vmatpush1.msra.mxu0 0.0
        %683 = vmatprep.subr.mxu0 0.0
        %684 = vmatpush1.msra.mxu0 0.0
        %685 = vmatprep.subr.mxu0 0.0
        %686 = vmatpush1.msra.mxu0 0.0
        %687 = vmatprep.mubr.f32.mxu0 0.0
        %688 = vmatmul.mubr.f32.gmra.mrb[0].mxu0 %v550
        %v689 = vpop.f32.mrb[0].mxu0
        %v690 = vadd.f32 0.0, %v689
        %v691 = vpop.f32.mrb[0].mxu0
        %v692 = vadd.f32 0.0, %v691
        %693 = vdwg.mxu0
        %v698 = vcombine.low %v619, %v621
        %v699 = vcombine.low %v690, %v692
        %702 = vst [vmem:[%s188] sm:$0xff] %v698
        %703 = vst [vmem:[%s188 + $0x8] sm:$0xff] %v699
      $region44: #{_lambda_.4} parent=31 // pred_fallthru
        _
      %s704 = smul.u32 %s19, %s18
      %s705 = smul.u32 4, %s704
      %p706 = scmp.lt.s32.totalorder %s705, 3
      %s707 = scalar_select %p706, %s705, 3
      %s708 = smul.addr %s707, 4
      %s709 = scalar_lea.vmem %s3, %s708
      // Predicated region
      $region45: #{_lambda_.4} parent=31 // pred_check
        %p710 = pneg %p114
      $region46: #{_lambda_.4} parent=31 // pred_check_branch
        %712 = sbr.rel (%p710) target = $region48
      $region47: #{_lambda_.4} parent=31 // pred_region
        %s713 = smul.u32 %s19, %s18
        %s714 = smul.u32 4, %s713
      $region48: #{_lambda_.4} parent=31 // pred_fallthru
        _
    $region32: #{_lambda_.4} parent=5 // pred_fallthru
      _
    %p715 = scmp.le.s32.totalorder 2, %s9
    // Predicated region
    $region49: #{_lambda_.4} parent=5 // pred_check
      %p716 = pneg %p715
    $region50: #{_lambda_.4} parent=5 // pred_check_branch
      %718 = sbr.rel (%p716) target = $region52
    $region51: #{_lambda_.4} parent=5 // pred_region
      %s719 = ssub.s32 %s9, 2
      // Predicated region
      $region53: #{_lambda_.4} parent=51 // pred_check
        %p720 = pneg %p120
      $region54: #{_lambda_.4} parent=51 // pred_check_branch
        %722 = sbr.rel (%p720) target = $region56
      $region55: #{_lambda_.4} parent=51 // pred_region
        %s723 = smul.u32 %s21, %s20
        %s724 = smul.u32 4, %s723
        %p725 = scmp.lt.s32.totalorder %s724, 3
        %s726 = scalar_select %p725, %s724, 3
        %s727 = smul.addr %s726, 4
        %s728 = scalar_lea.vmem %s3, %s727
      $region56: #{_lambda_.4} parent=51 // pred_fallthru
        _
    $region52: #{_lambda_.4} parent=5 // pred_fallthru
      _
  $region6: #{_lambda_.4} parent=0 // loop_footer
    %s13 = sadd.s32 1, %s9
  $region7: #{_lambda_.4} parent=0 // loop_footer_branch
    %8 = sbr.rel target = $region3
  $region8: #{_lambda_.4} parent=0 // loop_exit
    _

// kernel: _lambda_.5
$region0: #{_lambda_.5}
  #allocation0 [shape = 'u32[]', space=smem, size = 0x4, offset = 0x4, fixed_abs, tag = 'smem constant byte address 0x4 - core index']
  #allocation1 [shape = 'u32[144,128]{1,0:T(1,128)}', space=vmem, size = 0x12000, scoped, tag = 'internal scratch']
  #allocation2 [shape = 'f32[24,1]{1,0:T(8,128)}', space=vmem, size = 0x3000, scoped, tag = 'scratch operand']
  #allocation3 [shape = 'f32[24,1]{1,0:T(8,128)}', space=vmem, size = 0x3000, scoped, tag = 'scratch operand']
  %s0 = inlined_call_operand.vmem [shape: bf16[4,512], index: 0, kind: input, shape index: {}]
  %s1 = inlined_call_operand.vmem [shape: bf16[24,4], index: 1, kind: input, shape index: {}]
  %s2 = inlined_call_operand.vmem [shape: f32[4,24], index: 2, kind: input, shape index: {}]
  %s3 = inlined_call_operand.vmem [shape: f32[4,512], index: 3, kind: output, shape index: {}]
  %s4 = sld [smem:[#allocation0]]
  $region57: #{_lambda_.5} parent=0
    _
  %s6 = ssub.s32 1, %s4
  %s7 = scalar_select 0, %s6, %s4
  loop: start=0, step=1, limit=4
  $region2: #{_lambda_.5} parent=0 // loop_pre_header
    _
  $region3: #{_lambda_.5} parent=0 // loop_header
    %s9 = sphi 0, %s13
    %p10 = scmp.ge.s32.totalorder %s9, 4
    %s16 = sphi 0, %s28
    %s17 = sphi 0, %s24
    %s18 = sphi 0, %s16
    %s19 = sphi 0, %s17
    %s20 = sphi 0, %s18
    %s21 = sphi 0, %s19
    %s31 = sphi 0, %s33
    %s34 = sphi 0, %s31
    %s35 = sphi 0, %s34
    %s51 = sphi 0, %s35
    %s55 = sphi 0, %s55
    %s57 = sphi 0, %s55
    %s58 = sphi 0, %s57
    %s72 = sphi 0, %s58
    %s76 = sphi 0, %s76
    %s78 = sphi 0, %s76
    %s79 = sphi 0, %s78
    %s93 = sphi 0, %s79
    %s101 = sphi 0, %s103
    %s104 = sphi 0, %s101
    %s105 = sphi 0, %s104
    %s121 = sphi 0, %s105
  $region4: #{_lambda_.5} parent=0 // loop_header_branch
    %12 = sbr.rel (%p10) target = $region8
  $region5: #{_lambda_.5} parent=0 // loop_body
    %s14 = ssub.s32 %s9, 1
    %s15 = ssub.s32 %s9, 2
    %s22 = sadd.s32 1, %s17
    %p23 = scmp.ge.s32.totalorder %s22, 1
    %s24 = scalar_select %p23, 0, %s22
    %s25 = sadd.s32 1, %s16
    %s26 = scalar_select %p23, %s25, %s16
    %p27 = scmp.ge.s32.totalorder %s26, 2
    %s28 = scalar_select %p27, 0, %s26
    %s29 = ssub.s32 %s17, %s24
    %p30 = scmp.eq.s32.totalorder %s29, 0
    %s32 = sadd.s32 %s31, 1
    %s33 = scalar_select %p30, %s31, %s32
    %p36 = pneg %p30
    %p37 = scmp.eq.s32.totalorder %s9, 1
    %p38 = por %p36, %p37
    %p39 = scmp.ne.s32.totalorder %s31, %s34
    %p40 = scmp.eq.s32.totalorder %s9, 0
    %p41 = por %p39, %p40
    %p42 = scmp.ne.s32.totalorder %s31, %s34
    %p43 = scmp.eq.s32.totalorder %s14, 1
    %p44 = por %p42, %p43
    %p45 = scmp.ne.s32.totalorder %s34, %s35
    %p46 = scmp.eq.s32.totalorder %s14, 0
    %p47 = por %p45, %p46
    %p48 = scmp.ne.s32.totalorder %s34, %s35
    %p49 = scmp.eq.s32.totalorder %s15, 1
    %p50 = por %p48, %p49
    %p52 = scmp.ne.s32.totalorder %s35, %s51
    %p53 = scmp.eq.s32.totalorder %s15, 0
    %p54 = por %p52, %p53
    %s56 = sadd.s32 %s55, 1
    %p59 = scmp.eq.s32.totalorder %s9, 1
    %p60 = scmp.ne.s32.totalorder %s55, %s57
    %p61 = scmp.eq.s32.totalorder %s9, 0
    %p62 = por %p60, %p61
    %p63 = scmp.ne.s32.totalorder %s55, %s57
    %p64 = scmp.eq.s32.totalorder %s14, 1
    %p65 = por %p63, %p64
    %p66 = scmp.ne.s32.totalorder %s57, %s58
    %p67 = scmp.eq.s32.totalorder %s14, 0
    %p68 = por %p66, %p67
    %p69 = scmp.ne.s32.totalorder %s57, %s58
    %p70 = scmp.eq.s32.totalorder %s15, 1
    %p71 = por %p69, %p70
    %p73 = scmp.ne.s32.totalorder %s58, %s72
    %p74 = scmp.eq.s32.totalorder %s15, 0
    %p75 = por %p73, %p74
    %s77 = sadd.s32 %s76, 1
    %p80 = scmp.eq.s32.totalorder %s9, 1
    %p81 = scmp.ne.s32.totalorder %s76, %s78
    %p82 = scmp.eq.s32.totalorder %s9, 0
    %p83 = por %p81, %p82
    %p84 = scmp.ne.s32.totalorder %s76, %s78
    %p85 = scmp.eq.s32.totalorder %s14, 1
    %p86 = por %p84, %p85
    %p87 = scmp.ne.s32.totalorder %s78, %s79
    %p88 = scmp.eq.s32.totalorder %s14, 0
    %p89 = por %p87, %p88
    %p90 = scmp.ne.s32.totalorder %s78, %s79
    %p91 = scmp.eq.s32.totalorder %s15, 1
    %p92 = por %p90, %p91
    %p94 = scmp.ne.s32.totalorder %s79, %s93
    %p95 = scmp.eq.s32.totalorder %s15, 0
    %p96 = por %p94, %p95
    %s97 = smul.u32 %s17, %s16
    %s98 = smul.u32 %s24, %s28
    %s99 = ssub.s32 %s97, %s98
    %p100 = scmp.eq.s32.totalorder %s99, 0
    %s102 = sadd.s32 %s101, 1
    %s103 = scalar_select %p100, %s101, %s102
    %p106 = pneg %p100
    %p107 = scmp.eq.s32.totalorder %s9, 1
    %p108 = por %p106, %p107
    %p109 = scmp.ne.s32.totalorder %s101, %s104
    %p110 = scmp.eq.s32.totalorder %s9, 0
    %p111 = por %p109, %p110
    %p112 = scmp.ne.s32.totalorder %s101, %s104
    %p113 = scmp.eq.s32.totalorder %s14, 1
    %p114 = por %p112, %p113
    %p115 = scmp.ne.s32.totalorder %s104, %s105
    %p116 = scmp.eq.s32.totalorder %s14, 0
    %p117 = por %p115, %p116
    %p118 = scmp.ne.s32.totalorder %s104, %s105
    %p119 = scmp.eq.s32.totalorder %s15, 1
    %p120 = por %p118, %p119
    %p122 = scmp.ne.s32.totalorder %s105, %s121
    %p123 = scmp.eq.s32.totalorder %s15, 0
    %p124 = por %p122, %p123
    %p125 = scmp.le.s32.totalorder 1, %s9
    %p126 = scmp.lt.s32.totalorder %s9, 3
    %p127 = pnand %p125, %p126
    %p128 = pneg %p127
    // Predicated region
    $region9: #{_lambda_.5} parent=5 // pred_check
      _
    $region10: #{_lambda_.5} parent=5 // pred_check_branch
      %130 = sbr.rel (%p127) target = $region12
    $region11: #{_lambda_.5} parent=5 // pred_region
      %s131 = ssub.s32 %s9, 1
      // Predicated region
      $region13: #{_lambda_.5} parent=11 // pred_check
        %p132 = pneg %p47
      $region14: #{_lambda_.5} parent=11 // pred_check_branch
        %134 = sbr.rel (%p132) target = $region16
      $region15: #{_lambda_.5} parent=11 // pred_region
        %s135 = smul.u32 4, %s19
        %p136 = scmp.lt.s32.totalorder %s135, 3
        %s137 = scalar_select %p136, %s135, 3
        %s138 = smul.addr %s137, 2
        %s139 = scalar_lea.vmem %s0, %s138
        %s140 = smul.u32 4, %s19
      $region16: #{_lambda_.5} parent=11 // pred_fallthru
        _
      // Predicated region
      $region17: #{_lambda_.5} parent=11 // pred_check
        %p141 = pneg %p68
      $region18: #{_lambda_.5} parent=11 // pred_check_branch
        %143 = sbr.rel (%p141) target = $region20
      $region19: #{_lambda_.5} parent=11 // pred_region
        _
      $region20: #{_lambda_.5} parent=11 // pred_fallthru
        _
      // Predicated region
      $region21: #{_lambda_.5} parent=11 // pred_check
        %p144 = pneg %p89
      $region22: #{_lambda_.5} parent=11 // pred_check_branch
        %146 = sbr.rel (%p144) target = $region24
      $region23: #{_lambda_.5} parent=11 // pred_region
        _
      $region24: #{_lambda_.5} parent=11 // pred_fallthru
        _
    $region12: #{_lambda_.5} parent=5 // pred_fallthru
      _
    %p147 = scmp.lt.s32.totalorder %s9, 2
    // Predicated region
    $region25: #{_lambda_.5} parent=5 // pred_check
      %p148 = pneg %p147
    $region26: #{_lambda_.5} parent=5 // pred_check_branch
      %150 = sbr.rel (%p148) target = $region28
    $region27: #{_lambda_.5} parent=5 // pred_region
      _
    $region28: #{_lambda_.5} parent=5 // pred_fallthru
      _
    %p151 = scmp.le.s32.totalorder 1, %s9
    %p152 = scmp.lt.s32.totalorder %s9, 3
    %p153 = pnand %p151, %p152
    %p154 = pneg %p153
    // Predicated region
    $region29: #{_lambda_.5} parent=5 // pred_check
      _
    $region30: #{_lambda_.5} parent=5 // pred_check_branch
      %156 = sbr.rel (%p153) target = $region32
    $region31: #{_lambda_.5} parent=5 // pred_region
      %s157 = ssub.s32 %s9, 1
      %s158 = smul.u32 4, %s19
      %p159 = scmp.lt.s32.totalorder %s158, 3
      %s160 = scalar_select %p159, %s158, 3
      %s161 = smul.addr %s160, 2
      %s162 = scalar_lea.vmem %s0, %s161
      %p163 = pneg %p47
      %p164 = pneg %p44
      %p165 = pneg %p68
      %p166 = pneg %p65
      %p167 = pneg %p89
      %p168 = pneg %p86
      %p169 = pneg %p117
      %p170 = pneg %p114
      %s171 = smul.u32 %s19, %s18
      %s172 = smul.u32 4, %s171
      %p173 = scmp.lt.s32.totalorder %s172, 3
      %s174 = scalar_select %p173, %s172, 3
      %s175 = smul.addr %s174, 4
      %s176 = scalar_lea.vmem %s3, %s175
      %s177 = smul.u32 4, %s19
      %p178 = scmp.lt.s32.totalorder %s177, 3
      %s179 = scalar_select %p178, %s177, 3
      %s180 = smul.addr %s179, 2
      %s181 = scalar_lea.vmem %s0, %s180
      %s182 = smul.u32 4, %s19
      %s183 = smul.u32 %s19, %s18
      %s184 = smul.u32 4, %s183
      %p185 = scmp.lt.s32.totalorder %s184, 3
      %s186 = scalar_select %p185, %s184, 3
      %s187 = smul.addr %s186, 4
      %s188 = scalar_lea.vmem %s3, %s187
      %s189 = smul.u32 %s19, %s18
      %s190 = smul.u32 4, %s189
      %v192 = vld [vmem:[%s1] sm:$0xf]
      %v193 = vld [vmem:[%s1 + $0x4] sm:$0xf]
      %v194 = vld [vmem:[%s1 + $0x8] sm:$0xf]
      %v195 = vld [vmem:[%s181] sm:$0xff]
      %v199 = vunpack.c.l.b16 %v192
      %v200 = vunpack.c.l.b16 %v193
      %v201 = vunpack.c.l.b16 %v194
      %v202 = vpack.c.b16 %v200, %v199
      %v203 = vpack.c.b16 %v201, %v201
      %v205 = vcombine.high %v195, %v195
      %v207 = vunpack.c.l.s4 1983009808
      %v208 = vunpack.c.0.s8 %v207
      %v209 = vlaneseq
      %v210 = vshrl.u32 %v209, 7
      %v211 = vsub.s32 %v208, %v210
      %v212 = vrot.slane %v195, %v211
      %v214 = vunpack.c.l.s4 1983009808
      %v215 = vunpack.c.0.s8 %v214
      %v216 = vlaneseq
      %v217 = vshrl.u32 %v216, 7
      %v218 = vsub.s32 %v215, %v217
      %v219 = vrot.slane %v205, %v218
      %v220 = vcombine.high %v212, %v212
      %v221 = vcombine.high %v219, %v219
      %vm222 = vcmask 31744
      %v224 = vsel %vm222, %v202, 0
      %v227 = vsel %vm222, %v203, 0
      %vm229 = vcmask 1041408
      %v231 = vsel %vm229, %v212, 0
      %v234 = vsel %vm229, %v220, 0
      %v237 = vsel %vm229, %v219, 0
      %v240 = vsel %vm229, %v221, 0
      %242 = vmatprep.subr.bf16.mxu0 %v234
      %243 = vmatpush1.bf16.msra.mxu0 %v231
      %244 = vmatprep.subr.bf16.mxu0 0
      %245 = vmatpush1.bf16.msra.mxu0 0
      %246 = vmatprep.subr.bf16.mxu0 0
      %247 = vmatpush1.bf16.msra.mxu0 0
      %248 = vmatprep.subr.bf16.mxu0 0
      %249 = vmatpush1.bf16.msra.mxu0 0
      %250 = vmatprep.subr.bf16.mxu0 0
      %251 = vmatpush1.bf16.msra.mxu0 0
      %252 = vmatprep.subr.bf16.mxu0 0
      %253 = vmatpush1.bf16.msra.mxu0 0
      %254 = vmatprep.subr.bf16.mxu0 0
      %255 = vmatpush1.bf16.msra.mxu0 0
      %256 = vmatprep.subr.bf16.mxu0 0
      %257 = vmatpush1.bf16.msra.mxu0 0
      %258 = vmatprep.subr.bf16.mxu0 0
      %259 = vmatpush1.bf16.msra.mxu0 0
      %260 = vmatprep.subr.bf16.mxu0 0
      %261 = vmatpush1.bf16.msra.mxu0 0
      %262 = vmatprep.subr.bf16.mxu0 0
      %263 = vmatpush1.bf16.msra.mxu0 0
      %264 = vmatprep.subr.bf16.mxu0 0
      %265 = vmatpush1.bf16.msra.mxu0 0
      %266 = vmatprep.subr.bf16.mxu0 0
      %267 = vmatpush1.bf16.msra.mxu0 0
      %268 = vmatprep.subr.bf16.mxu0 0
      %269 = vmatpush1.bf16.msra.mxu0 0
      %270 = vmatprep.subr.bf16.mxu0 0
      %271 = vmatpush1.bf16.msra.mxu0 0
      %272 = vmatprep.subr.bf16.mxu0 0
      %273 = vmatpush1.bf16.msra.mxu0 0
      %274 = vmatprep.mubr.bf16.mxu0 0
      %275 = vmatmul.mubr.bf16.gmra.mrb[0].mxu0 %v224
      %v276 = vpop.f32.mrb[0].mxu0
      %v277 = vadd.f32 0.0, %v276
      %v278 = vpop.f32.mrb[0].mxu0
      %v279 = vadd.f32 0.0, %v278
      %v280 = vpop.f32.mrb[0].mxu0
      %v281 = vadd.f32 0.0, %v280
      %v282 = vpop.f32.mrb[0].mxu0
      %v283 = vadd.f32 0.0, %v282
      %284 = vmatprep.mubr.bf16.mxu0 0
      %285 = vmatmul.mubr.bf16.gmra.mrb[0].mxu0 %v227
      %v286 = vpop.f32.mrb[0].mxu0
      %v287 = vadd.f32 0.0, %v286
      %v288 = vpop.f32.mrb[0].mxu0
      %v289 = vadd.f32 0.0, %v288
      %v290 = vpop.f32.mrb[0].mxu0
      %v291 = vpop.f32.mrb[0].mxu0
      %292 = vdwg.mxu0
      %293 = vmatprep.subr.bf16.mxu0 %v240
      %294 = vmatpush1.bf16.msra.mxu0 %v237
      %295 = vmatprep.subr.bf16.mxu0 0
      %296 = vmatpush1.bf16.msra.mxu0 0
      %297 = vmatprep.subr.bf16.mxu0 0
      %298 = vmatpush1.bf16.msra.mxu0 0
      %299 = vmatprep.subr.bf16.mxu0 0
      %300 = vmatpush1.bf16.msra.mxu0 0
      %301 = vmatprep.subr.bf16.mxu0 0
      %302 = vmatpush1.bf16.msra.mxu0 0
      %303 = vmatprep.subr.bf16.mxu0 0
      %304 = vmatpush1.bf16.msra.mxu0 0
      %305 = vmatprep.subr.bf16.mxu0 0
      %306 = vmatpush1.bf16.msra.mxu0 0
      %307 = vmatprep.subr.bf16.mxu0 0
      %308 = vmatpush1.bf16.msra.mxu0 0
      %309 = vmatprep.subr.bf16.mxu0 0
      %310 = vmatpush1.bf16.msra.mxu0 0
      %311 = vmatprep.subr.bf16.mxu0 0
      %312 = vmatpush1.bf16.msra.mxu0 0
      %313 = vmatprep.subr.bf16.mxu0 0
      %314 = vmatpush1.bf16.msra.mxu0 0
      %315 = vmatprep.subr.bf16.mxu0 0
      %316 = vmatpush1.bf16.msra.mxu0 0
      %317 = vmatprep.subr.bf16.mxu0 0
      %318 = vmatpush1.bf16.msra.mxu0 0
      %319 = vmatprep.subr.bf16.mxu0 0
      %320 = vmatpush1.bf16.msra.mxu0 0
      %321 = vmatprep.subr.bf16.mxu0 0
      %322 = vmatpush1.bf16.msra.mxu0 0
      %323 = vmatprep.subr.bf16.mxu0 0
      %324 = vmatpush1.bf16.msra.mxu0 0
      %325 = vmatprep.mubr.bf16.mxu0 0
      %326 = vmatmul.mubr.bf16.gmra.mrb[0].mxu0 %v224
      %v327 = vpop.f32.mrb[0].mxu0
      %v328 = vadd.f32 0.0, %v327
      %v329 = vpop.f32.mrb[0].mxu0
      %v330 = vadd.f32 0.0, %v329
      %v331 = vpop.f32.mrb[0].mxu0
      %v332 = vadd.f32 0.0, %v331
      %v333 = vpop.f32.mrb[0].mxu0
      %v334 = vadd.f32 0.0, %v333
      %335 = vmatprep.mubr.bf16.mxu0 0
      %336 = vmatmul.mubr.bf16.gmra.mrb[0].mxu0 %v227
      %v337 = vpop.f32.mrb[0].mxu0
      %v338 = vadd.f32 0.0, %v337
      %v339 = vpop.f32.mrb[0].mxu0
      %v340 = vadd.f32 0.0, %v339
      %v341 = vpop.f32.mrb[0].mxu0
      %v342 = vpop.f32.mrb[0].mxu0
      %343 = vdwg.mxu0
      %p344 = scmp.eq.s32.totalorder %s18, 0
      %p345 = scmp.eq.s32.totalorder %s19, 0
      %p346 = pnand %p344, %p345
      %p347 = pneg %p346
      // Predicated region
      $region33: #{_lambda_.5} parent=31 // pred_check
        _
      $region34: #{_lambda_.5} parent=31 // pred_check_branch
        %349 = sbr.rel (%p346) target = $region36
      $region35: #{_lambda_.5} parent=31 // pred_region
        %vm350 = vcmask 7168
        %351 = vst.msk [vmem:[#allocation2] sm:$0xff] %vm350, 0.0
        %352 = vst.msk [vmem:[#allocation2 + $0x8] sm:$0xff] %vm350, 0.0
        %353 = vst.msk [vmem:[#allocation2 + $0x10] sm:$0xff] %vm350, 0.0
        %354 = vst.msk [vmem:[#allocation3] sm:$0xff] %vm350, 0.0
        %355 = vst.msk [vmem:[#allocation3 + $0x8] sm:$0xff] %vm350, 0.0
        %356 = vst.msk [vmem:[#allocation3 + $0x10] sm:$0xff] %vm350, 0.0
      $region36: #{_lambda_.5} parent=31 // pred_fallthru
        _
      // Predicated region
      $region37: #{_lambda_.5} parent=31 // pred_check
        %p357 = pneg %p344
      $region38: #{_lambda_.5} parent=31 // pred_check_branch
        %359 = sbr.rel (%p357) target = $region40
      $region39: #{_lambda_.5} parent=31 // pred_region
        %v360 = vld [vmem:[#allocation2] sm:$0xff]
        %v361 = vld [vmem:[#allocation2 + $0x8] sm:$0xff]
        %v362 = vld [vmem:[#allocation2 + $0x10] sm:$0xff]
        %v363 = vadd.f32 %v277, %v279
        %v364 = vadd.f32 %v363, %v328
        %v365 = vadd.f32 %v364, %v330
        %366 = vadd.xlane.f32.xlu0 %v365
        %v367 = vpop.xlane.xlu0 %366
        %v368 = vadd.f32 %v281, %v283
        %v369 = vadd.f32 %v368, %v332
        %v370 = vadd.f32 %v369, %v334
        %371 = vadd.xlane.f32.xlu0 %v370
        %v372 = vpop.xlane.xlu0 %371
        %v373 = vadd.f32 %v287, %v289
        %v374 = vadd.f32 %v373, %v338
        %v375 = vadd.f32 %v374, %v340
        %376 = vadd.xlane.f32.xlu0 %v375
        %v377 = vpop.xlane.xlu0 %376
        %v378 = vadd.f32 %v360, %v367
        %v379 = vadd.f32 %v361, %v372
        %v380 = vadd.f32 %v362, %v377
        %vm381 = vcmask 7168
        %382 = vst.msk [vmem:[#allocation2] sm:$0xff] %vm381, %v378
        %383 = vst.msk [vmem:[#allocation2 + $0x8] sm:$0xff] %vm381, %v379
        %384 = vst.msk [vmem:[#allocation2 + $0x10] sm:$0xff] %vm381, %v380
        %v385 = vld [vmem:[#allocation3] sm:$0xff]
        %v386 = vld [vmem:[#allocation3 + $0x8] sm:$0xff]
        %v387 = vld [vmem:[#allocation3 + $0x10] sm:$0xff]
        %v388 = vmul.f32 %v277, %v277
        %v389 = vmul.f32 %v279, %v279
        %v390 = vmul.f32 %v328, %v328
        %v391 = vmul.f32 %v330, %v330
        %v392 = vmul.f32 %v281, %v281
        %v393 = vmul.f32 %v283, %v283
        %v394 = vmul.f32 %v332, %v332
        %v395 = vmul.f32 %v334, %v334
        %v396 = vmul.f32 %v287, %v287
        %v397 = vmul.f32 %v289, %v289
        %v398 = vmul.f32 %v338, %v338
        %v399 = vmul.f32 %v340, %v340
        %v400 = vadd.f32 %v388, %v389
        %v401 = vadd.f32 %v400, %v390
        %v402 = vadd.f32 %v401, %v391
        %403 = vadd.xlane.f32.xlu0 %v402
        %v404 = vpop.xlane.xlu0 %403
        %v405 = vadd.f32 %v392, %v393
        %v406 = vadd.f32 %v405, %v394
        %v407 = vadd.f32 %v406, %v395
        %408 = vadd.xlane.f32.xlu0 %v407
        %v409 = vpop.xlane.xlu0 %408
        %v410 = vadd.f32 %v396, %v397
        %v411 = vadd.f32 %v410, %v398
        %v412 = vadd.f32 %v411, %v399
        %413 = vadd.xlane.f32.xlu0 %v412
        %v414 = vpop.xlane.xlu0 %413
        %v415 = vadd.f32 %v385, %v404
        %v416 = vadd.f32 %v386, %v409
        %v417 = vadd.f32 %v387, %v414
        %418 = vst.msk [vmem:[#allocation3] sm:$0xff] %vm381, %v415
        %419 = vst.msk [vmem:[#allocation3 + $0x8] sm:$0xff] %vm381, %v416
        %420 = vst.msk [vmem:[#allocation3 + $0x10] sm:$0xff] %vm381, %v417
      $region40: #{_lambda_.5} parent=31 // pred_fallthru
        _
      %p421 = scmp.eq.s32.totalorder %s18, 1
      // Predicated region
      $region41: #{_lambda_.5} parent=31 // pred_check
        %p422 = pneg %p421
      $region42: #{_lambda_.5} parent=31 // pred_check_branch
        %424 = sbr.rel (%p422) target = $region44
      $region43: #{_lambda_.5} parent=31 // pred_region
        %v425 = vld [vmem:[#allocation2] sm:$0xff]
        %v426 = vld [vmem:[#allocation2 + $0x8] sm:$0xff]
        %v427 = vld [vmem:[#allocation2 + $0x10] sm:$0xff]
        %v428 = vmul.f32 %v425, 0.001953125
        %v429 = vmul.f32 %v426, 0.001953125
        %v430 = vmul.f32 %v427, 0.001953125
        %v431 = vld [vmem:[#allocation3] sm:$0xff]
        %v432 = vld [vmem:[#allocation3 + $0x8] sm:$0xff]
        %v433 = vld [vmem:[#allocation3 + $0x10] sm:$0xff]
        %v434 = vmul.f32 %v431, 0.001953125
        %v435 = vmul.f32 %v432, 0.001953125
        %v436 = vmul.f32 %v433, 0.001953125
        %v437 = vmul.f32 %v428, %v428
        %v438 = vmul.f32 %v429, %v429
        %v439 = vmul.f32 %v430, %v430
        %v440 = vsub.f32 %v434, %v437
        %v441 = vsub.f32 %v435, %v438
        %v442 = vsub.f32 %v436, %v439
        %v443 = vmax.f32 %v440, 0.0
        %v444 = vmax.f32 %v441, 0.0
        %v445 = vmax.f32 %v442, 0.0
        %447 = vset.pattern.permute.xlu0 0
        %448 = vperm.xlu0 %447, %v428
        %v449 = vpop.permute.xlu0 %448
        %452 = vset.pattern.permute.xlu0 0
        %453 = vperm.xlu0 %452, %v429
        %v454 = vpop.permute.xlu0 %453
        %457 = vset.pattern.permute.xlu0 0
        %458 = vperm.xlu0 %457, %v430
        %v459 = vpop.permute.xlu0 %458
        %v461 = vsub.f32 %v277, %v449
        %v462 = vsub.f32 %v279, %v449
        %v463 = vsub.f32 %v328, %v449
        %v464 = vsub.f32 %v330, %v449
        %v465 = vsub.f32 %v281, %v454
        %v466 = vsub.f32 %v283, %v454
        %v467 = vsub.f32 %v332, %v454
        %v468 = vsub.f32 %v334, %v454
        %v469 = vsub.f32 %v287, %v459
        %v470 = vsub.f32 %v289, %v459
        %v471 = vsub.f32 %v338, %v459
        %v472 = vsub.f32 %v340, %v459
        %v473 = vadd.f32 %v443, 1e-05
        %v474 = vadd.f32 %v444, 1e-05
        %v475 = vadd.f32 %v445, 1e-05
        %v476 = vrsqrt.pop %v473
        %v477 = vrsqrt.pop %v474
        %v478 = vrsqrt.pop %v475
        %480 = vset.pattern.permute.xlu0 0
        %481 = vperm.xlu0 %480, %v476
        %v482 = vpop.permute.xlu0 %481
        %485 = vset.pattern.permute.xlu0 0
        %486 = vperm.xlu0 %485, %v477
        %v487 = vpop.permute.xlu0 %486
        %490 = vset.pattern.permute.xlu0 0
        %491 = vperm.xlu0 %490, %v478
        %v492 = vpop.permute.xlu0 %491
        %v494 = vmul.f32 %v461, %v482
        %v495 = vmul.f32 %v462, %v482
        %v496 = vmul.f32 %v463, %v482
        %v497 = vmul.f32 %v464, %v482
        %v498 = vmul.f32 %v465, %v487
        %v499 = vmul.f32 %v466, %v487
        %v500 = vmul.f32 %v467, %v487
        %v501 = vmul.f32 %v468, %v487
        %v502 = vmul.f32 %v469, %v492
        %v503 = vmul.f32 %v470, %v492
        %v504 = vmul.f32 %v471, %v492
        %v505 = vmul.f32 %v472, %v492
        %v506 = vld [vmem:[%s2] sm:$0xf]
        %vm507 = vcmask 195584
        %v509 = vsel %vm507, %v506, 0
        %511 = vmatprep.subr.mxu0 %v495
        %512 = vmatpush1.msra.mxu0 %v494
        %513 = vmatprep.subr.mxu0 %v499
        %514 = vmatpush1.msra.mxu0 %v498
        %515 = vmatprep.subr.mxu0 %v503
        %516 = vmatpush1.msra.mxu0 %v502
        %517 = vmatprep.subr.mxu0 0.0
        %518 = vmatpush1.msra.mxu0 0.0
        %519 = vmatprep.subr.mxu0 0.0
        %520 = vmatpush1.msra.mxu0 0.0
        %521 = vmatprep.subr.mxu0 0.0
        %522 = vmatpush1.msra.mxu0 0.0
        %523 = vmatprep.subr.mxu0 0.0
        %524 = vmatpush1.msra.mxu0 0.0
        %525 = vmatprep.subr.mxu0 0.0
        %526 = vmatpush1.msra.mxu0 0.0
        %527 = vmatprep.subr.mxu0 0.0
        %528 = vmatpush1.msra.mxu0 0.0
        %529 = vmatprep.subr.mxu0 0.0
        %530 = vmatpush1.msra.mxu0 0.0
        %531 = vmatprep.subr.mxu0 0.0
        %532 = vmatpush1.msra.mxu0 0.0
        %533 = vmatprep.subr.mxu0 0.0
        %534 = vmatpush1.msra.mxu0 0.0
        %535 = vmatprep.subr.mxu0 0.0
        %536 = vmatpush1.msra.mxu0 0.0
        %537 = vmatprep.subr.mxu0 0.0
        %538 = vmatpush1.msra.mxu0 0.0
        %539 = vmatprep.subr.mxu0 0.0
        %540 = vmatpush1.msra.mxu0 0.0
        %541 = vmatprep.subr.mxu0 0.0
        %542 = vmatpush1.msra.mxu0 0.0
        %543 = vmatprep.subr.mxu0 0.0
        %544 = vmatpush1.msra.mxu0 0.0
        %545 = vmatprep.subr.mxu0 0.0
        %546 = vmatpush1.msra.mxu0 0.0
        %547 = vmatprep.subr.mxu0 0.0
        %548 = vmatpush1.msra.mxu0 0.0
        %549 = vmatprep.subr.mxu0 0.0
        %550 = vmatpush1.msra.mxu0 0.0
        %551 = vmatprep.subr.mxu0 0.0
        %552 = vmatpush1.msra.mxu0 0.0
        %553 = vmatprep.subr.mxu0 0.0
        %554 = vmatpush1.msra.mxu0 0.0
        %555 = vmatprep.subr.mxu0 0.0
        %556 = vmatpush1.msra.mxu0 0.0
        %557 = vmatprep.subr.mxu0 0.0
        %558 = vmatpush1.msra.mxu0 0.0
        %559 = vmatprep.subr.mxu0 0.0
        %560 = vmatpush1.msra.mxu0 0.0
        %561 = vmatprep.subr.mxu0 0.0
        %562 = vmatpush1.msra.mxu0 0.0
        %563 = vmatprep.subr.mxu0 0.0
        %564 = vmatpush1.msra.mxu0 0.0
        %565 = vmatprep.subr.mxu0 0.0
        %566 = vmatpush1.msra.mxu0 0.0
        %567 = vmatprep.subr.mxu0 0.0
        %568 = vmatpush1.msra.mxu0 0.0
        %569 = vmatprep.subr.mxu0 0.0
        %570 = vmatpush1.msra.mxu0 0.0
        %571 = vmatprep.subr.mxu0 0.0
        %572 = vmatpush1.msra.mxu0 0.0
        %573 = vmatprep.subr.mxu0 0.0
        %574 = vmatpush1.msra.mxu0 0.0
        %575 = vmatprep.mubr.f32.mxu0 0.0
        %576 = vmatmul.mubr.f32.gmra.mrb[0].mxu0 %v509
        %v577 = vpop.f32.mrb[0].mxu0
        %v578 = vadd.f32 0.0, %v577
        %v579 = vpop.f32.mrb[0].mxu0
        %v580 = vadd.f32 0.0, %v579
        %581 = vdwg.mxu0
        %582 = vmatprep.subr.mxu0 %v497
        %583 = vmatpush1.msra.mxu0 %v496
        %584 = vmatprep.subr.mxu0 %v501
        %585 = vmatpush1.msra.mxu0 %v500
        %586 = vmatprep.subr.mxu0 %v505
        %587 = vmatpush1.msra.mxu0 %v504
        %588 = vmatprep.subr.mxu0 0.0
        %589 = vmatpush1.msra.mxu0 0.0
        %590 = vmatprep.subr.mxu0 0.0
        %591 = vmatpush1.msra.mxu0 0.0
        %592 = vmatprep.subr.mxu0 0.0
        %593 = vmatpush1.msra.mxu0 0.0
        %594 = vmatprep.subr.mxu0 0.0
        %595 = vmatpush1.msra.mxu0 0.0
        %596 = vmatprep.subr.mxu0 0.0
        %597 = vmatpush1.msra.mxu0 0.0
        %598 = vmatprep.subr.mxu0 0.0
        %599 = vmatpush1.msra.mxu0 0.0
        %600 = vmatprep.subr.mxu0 0.0
        %601 = vmatpush1.msra.mxu0 0.0
        %602 = vmatprep.subr.mxu0 0.0
        %603 = vmatpush1.msra.mxu0 0.0
        %604 = vmatprep.subr.mxu0 0.0
        %605 = vmatpush1.msra.mxu0 0.0
        %606 = vmatprep.subr.mxu0 0.0
        %607 = vmatpush1.msra.mxu0 0.0
        %608 = vmatprep.subr.mxu0 0.0
        %609 = vmatpush1.msra.mxu0 0.0
        %610 = vmatprep.subr.mxu0 0.0
        %611 = vmatpush1.msra.mxu0 0.0
        %612 = vmatprep.subr.mxu0 0.0
        %613 = vmatpush1.msra.mxu0 0.0
        %614 = vmatprep.subr.mxu0 0.0
        %615 = vmatpush1.msra.mxu0 0.0
        %616 = vmatprep.subr.mxu0 0.0
        %617 = vmatpush1.msra.mxu0 0.0
        %618 = vmatprep.subr.mxu0 0.0
        %619 = vmatpush1.msra.mxu0 0.0
        %620 = vmatprep.subr.mxu0 0.0
        %621 = vmatpush1.msra.mxu0 0.0
        %622 = vmatprep.subr.mxu0 0.0
        %623 = vmatpush1.msra.mxu0 0.0
        %624 = vmatprep.subr.mxu0 0.0
        %625 = vmatpush1.msra.mxu0 0.0
        %626 = vmatprep.subr.mxu0 0.0
        %627 = vmatpush1.msra.mxu0 0.0
        %628 = vmatprep.subr.mxu0 0.0
        %629 = vmatpush1.msra.mxu0 0.0
        %630 = vmatprep.subr.mxu0 0.0
        %631 = vmatpush1.msra.mxu0 0.0
        %632 = vmatprep.subr.mxu0 0.0
        %633 = vmatpush1.msra.mxu0 0.0
        %634 = vmatprep.subr.mxu0 0.0
        %635 = vmatpush1.msra.mxu0 0.0
        %636 = vmatprep.subr.mxu0 0.0
        %637 = vmatpush1.msra.mxu0 0.0
        %638 = vmatprep.subr.mxu0 0.0
        %639 = vmatpush1.msra.mxu0 0.0
        %640 = vmatprep.subr.mxu0 0.0
        %641 = vmatpush1.msra.mxu0 0.0
        %642 = vmatprep.subr.mxu0 0.0
        %643 = vmatpush1.msra.mxu0 0.0
        %644 = vmatprep.subr.mxu0 0.0
        %645 = vmatpush1.msra.mxu0 0.0
        %646 = vmatprep.mubr.f32.mxu0 0.0
        %647 = vmatmul.mubr.f32.gmra.mrb[0].mxu0 %v509
        %v648 = vpop.f32.mrb[0].mxu0
        %v649 = vadd.f32 0.0, %v648
        %v650 = vpop.f32.mrb[0].mxu0
        %v651 = vadd.f32 0.0, %v650
        %652 = vdwg.mxu0
        %v657 = vcombine.low %v578, %v580
        %v658 = vcombine.low %v649, %v651
        %661 = vst [vmem:[%s188] sm:$0xff] %v657
        %662 = vst [vmem:[%s188 + $0x8] sm:$0xff] %v658
      $region44: #{_lambda_.5} parent=31 // pred_fallthru
        _
      %s663 = smul.u32 %s19, %s18
      %s664 = smul.u32 4, %s663
      %p665 = scmp.lt.s32.totalorder %s664, 3
      %s666 = scalar_select %p665, %s664, 3
      %s667 = smul.addr %s666, 4
      %s668 = scalar_lea.vmem %s3, %s667
      // Predicated region
      $region45: #{_lambda_.5} parent=31 // pred_check
        %p669 = pneg %p114
      $region46: #{_lambda_.5} parent=31 // pred_check_branch
        %671 = sbr.rel (%p669) target = $region48
      $region47: #{_lambda_.5} parent=31 // pred_region
        %s672 = smul.u32 %s19, %s18
        %s673 = smul.u32 4, %s672
      $region48: #{_lambda_.5} parent=31 // pred_fallthru
        _
    $region32: #{_lambda_.5} parent=5 // pred_fallthru
      _
    %p674 = scmp.le.s32.totalorder 2, %s9
    // Predicated region
    $region49: #{_lambda_.5} parent=5 // pred_check
      %p675 = pneg %p674
    $region50: #{_lambda_.5} parent=5 // pred_check_branch
      %677 = sbr.rel (%p675) target = $region52
    $region51: #{_lambda_.5} parent=5 // pred_region
      %s678 = ssub.s32 %s9, 2
      // Predicated region
      $region53: #{_lambda_.5} parent=51 // pred_check
        %p679 = pneg %p120
      $region54: #{_lambda_.5} parent=51 // pred_check_branch
        %681 = sbr.rel (%p679) target = $region56
      $region55: #{_lambda_.5} parent=51 // pred_region
        %s682 = smul.u32 %s21, %s20
        %s683 = smul.u32 4, %s682
        %p684 = scmp.lt.s32.totalorder %s683, 3
        %s685 = scalar_select %p684, %s683, 3
        %s686 = smul.addr %s685, 4
        %s687 = scalar_lea.vmem %s3, %s686
      $region56: #{_lambda_.5} parent=51 // pred_fallthru
        _
    $region52: #{_lambda_.5} parent=5 // pred_fallthru
      _
  $region6: #{_lambda_.5} parent=0 // loop_footer
    %s13 = sadd.s32 1, %s9
  $region7: #{_lambda_.5} parent=0 // loop_footer_branch
    %8 = sbr.rel target = $region3
  $region8: #{_lambda_.5} parent=0 // loop_exit
    _

// kernel: _lambda_.6
$region0: #{_lambda_.6}
  #allocation0 [shape = 'u32[]', space=smem, size = 0x4, offset = 0x4, fixed_abs, tag = 'smem constant byte address 0x4 - core index']
  #allocation1 [shape = 'u32[144,128]{1,0:T(1,128)}', space=vmem, size = 0x12000, scoped, tag = 'internal scratch']
  %s0 = inlined_call_operand.vmem [shape: f32[8,18,18], index: 0, kind: input, shape index: {}]
  %s1 = inlined_call_operand.vmem [shape: f32[1,16,16], index: 1, kind: input, shape index: {}]
  %s2 = inlined_call_operand.vmem [shape: f32[8,16,16], index: 2, kind: output, shape index: {}]
  %s3 = sld [smem:[#allocation0]]
  $region18: #{_lambda_.6} parent=0
    _
  %s5 = ssub.s32 1, %s3
  %s6 = scalar_select 0, %s5, %s3
  // Predicated region
  $region2: #{_lambda_.6} parent=0 // pred_check
    _
  $region3: #{_lambda_.6} parent=0 // pred_check_branch
    %8 = sbr.rel (0) target = $region5
  $region4: #{_lambda_.6} parent=0 // pred_region
    _
  $region5: #{_lambda_.6} parent=0 // pred_fallthru
    _
  // Predicated region
  $region6: #{_lambda_.6} parent=0 // pred_check
    _
  $region7: #{_lambda_.6} parent=0 // pred_check_branch
    %10 = sbr.rel (0) target = $region9
  $region8: #{_lambda_.6} parent=0 // pred_region
    _
  $region9: #{_lambda_.6} parent=0 // pred_fallthru
    _
  %v11 = vld [vmem:[%s0] sm:$0xff]
  %v12 = vld [vmem:[%s0 + $0x8] sm:$0xff]
  %v13 = vld [vmem:[%s0 + $0x10] sm:$0x3]
  %v14 = vld [vmem:[%s0 + $0x18] sm:$0xff]
  %v15 = vld [vmem:[%s0 + $0x20] sm:$0xff]
  %v16 = vld [vmem:[%s0 + $0x28] sm:$0x3]
  %v17 = vld [vmem:[%s0 + $0x30] sm:$0xff]
  %v18 = vld [vmem:[%s0 + $0x38] sm:$0xff]
  %v19 = vld [vmem:[%s0 + $0x40] sm:$0x3]
  %v20 = vld [vmem:[%s0 + $0x48] sm:$0xff]
  %v21 = vld [vmem:[%s0 + $0x50] sm:$0xff]
  %v22 = vld [vmem:[%s0 + $0x58] sm:$0x3]
  %v23 = vld [vmem:[%s0 + $0x60] sm:$0xff]
  %v24 = vld [vmem:[%s0 + $0x68] sm:$0xff]
  %v25 = vld [vmem:[%s0 + $0x70] sm:$0x3]
  %v26 = vld [vmem:[%s0 + $0x78] sm:$0xff]
  %v27 = vld [vmem:[%s0 + $0x80] sm:$0xff]
  %v28 = vld [vmem:[%s0 + $0x88] sm:$0x3]
  %v29 = vld [vmem:[%s0 + $0x90] sm:$0xff]
  %v30 = vld [vmem:[%s0 + $0x98] sm:$0xff]
  %v31 = vld [vmem:[%s0 + $0xa0] sm:$0x3]
  %v32 = vld [vmem:[%s0 + $0xa8] sm:$0xff]
  %v33 = vld [vmem:[%s0 + $0xb0] sm:$0xff]
  %v34 = vld [vmem:[%s0 + $0xb8] sm:$0x3]
  %59 = vrot.lane.b32.xlu0 %v11, 127
  %v60 = vpop.permute.xlu0 %59
  %61 = vrot.lane.b32.xlu0 %v12, 127
  %v62 = vpop.permute.xlu0 %61
  %63 = vrot.lane.b32.xlu0 %v13, 127
  %v64 = vpop.permute.xlu0 %63
  %65 = vrot.lane.b32.xlu0 %v14, 127
  %v66 = vpop.permute.xlu0 %65
  %67 = vrot.lane.b32.xlu0 %v15, 127
  %v68 = vpop.permute.xlu0 %67
  %69 = vrot.lane.b32.xlu0 %v16, 127
  %v70 = vpop.permute.xlu0 %69
  %71 = vrot.lane.b32.xlu0 %v17, 127
  %v72 = vpop.permute.xlu0 %71
  %73 = vrot.lane.b32.xlu0 %v18, 127
  %v74 = vpop.permute.xlu0 %73
  %75 = vrot.lane.b32.xlu0 %v19, 127
  %v76 = vpop.permute.xlu0 %75
  %77 = vrot.lane.b32.xlu0 %v20, 127
  %v78 = vpop.permute.xlu0 %77
  %79 = vrot.lane.b32.xlu0 %v21, 127
  %v80 = vpop.permute.xlu0 %79
  %81 = vrot.lane.b32.xlu0 %v22, 127
  %v82 = vpop.permute.xlu0 %81
  %83 = vrot.lane.b32.xlu0 %v23, 127
  %v84 = vpop.permute.xlu0 %83
  %85 = vrot.lane.b32.xlu0 %v24, 127
  %v86 = vpop.permute.xlu0 %85
  %87 = vrot.lane.b32.xlu0 %v25, 127
  %v88 = vpop.permute.xlu0 %87
  %89 = vrot.lane.b32.xlu0 %v26, 127
  %v90 = vpop.permute.xlu0 %89
  %91 = vrot.lane.b32.xlu0 %v27, 127
  %v92 = vpop.permute.xlu0 %91
  %93 = vrot.lane.b32.xlu0 %v28, 127
  %v94 = vpop.permute.xlu0 %93
  %95 = vrot.lane.b32.xlu0 %v29, 127
  %v96 = vpop.permute.xlu0 %95
  %97 = vrot.lane.b32.xlu0 %v30, 127
  %v98 = vpop.permute.xlu0 %97
  %99 = vrot.lane.b32.xlu0 %v31, 127
  %v100 = vpop.permute.xlu0 %99
  %101 = vrot.lane.b32.xlu0 %v32, 127
  %v102 = vpop.permute.xlu0 %101
  %103 = vrot.lane.b32.xlu0 %v33, 127
  %v104 = vpop.permute.xlu0 %103
  %105 = vrot.lane.b32.xlu0 %v34, 127
  %v106 = vpop.permute.xlu0 %105
  %v131 = vadd.f32 %v11, %v60
  %v132 = vadd.f32 %v12, %v62
  %v133 = vadd.f32 %v13, %v64
  %v134 = vadd.f32 %v14, %v66
  %v135 = vadd.f32 %v15, %v68
  %v136 = vadd.f32 %v16, %v70
  %v137 = vadd.f32 %v17, %v72
  %v138 = vadd.f32 %v18, %v74
  %v139 = vadd.f32 %v19, %v76
  %v140 = vadd.f32 %v20, %v78
  %v141 = vadd.f32 %v21, %v80
  %v142 = vadd.f32 %v22, %v82
  %v143 = vadd.f32 %v23, %v84
  %v144 = vadd.f32 %v24, %v86
  %v145 = vadd.f32 %v25, %v88
  %v146 = vadd.f32 %v26, %v90
  %v147 = vadd.f32 %v27, %v92
  %v148 = vadd.f32 %v28, %v94
  %v149 = vadd.f32 %v29, %v96
  %v150 = vadd.f32 %v30, %v98
  %v151 = vadd.f32 %v31, %v100
  %v152 = vadd.f32 %v32, %v102
  %v153 = vadd.f32 %v33, %v104
  %v154 = vadd.f32 %v34, %v106
  %155 = vrot.lane.b32.xlu0 %v11, 126
  %v156 = vpop.permute.xlu0 %155
  %157 = vrot.lane.b32.xlu0 %v12, 126
  %v158 = vpop.permute.xlu0 %157
  %159 = vrot.lane.b32.xlu0 %v13, 126
  %v160 = vpop.permute.xlu0 %159
  %161 = vrot.lane.b32.xlu0 %v14, 126
  %v162 = vpop.permute.xlu0 %161
  %163 = vrot.lane.b32.xlu0 %v15, 126
  %v164 = vpop.permute.xlu0 %163
  %165 = vrot.lane.b32.xlu0 %v16, 126
  %v166 = vpop.permute.xlu0 %165
  %167 = vrot.lane.b32.xlu0 %v17, 126
  %v168 = vpop.permute.xlu0 %167
  %169 = vrot.lane.b32.xlu0 %v18, 126
  %v170 = vpop.permute.xlu0 %169
  %171 = vrot.lane.b32.xlu0 %v19, 126
  %v172 = vpop.permute.xlu0 %171
  %173 = vrot.lane.b32.xlu0 %v20, 126
  %v174 = vpop.permute.xlu0 %173
  %175 = vrot.lane.b32.xlu0 %v21, 126
  %v176 = vpop.permute.xlu0 %175
  %177 = vrot.lane.b32.xlu0 %v22, 126
  %v178 = vpop.permute.xlu0 %177
  %179 = vrot.lane.b32.xlu0 %v23, 126
  %v180 = vpop.permute.xlu0 %179
  %181 = vrot.lane.b32.xlu0 %v24, 126
  %v182 = vpop.permute.xlu0 %181
  %183 = vrot.lane.b32.xlu0 %v25, 126
  %v184 = vpop.permute.xlu0 %183
  %185 = vrot.lane.b32.xlu0 %v26, 126
  %v186 = vpop.permute.xlu0 %185
  %187 = vrot.lane.b32.xlu0 %v27, 126
  %v188 = vpop.permute.xlu0 %187
  %189 = vrot.lane.b32.xlu0 %v28, 126
  %v190 = vpop.permute.xlu0 %189
  %191 = vrot.lane.b32.xlu0 %v29, 126
  %v192 = vpop.permute.xlu0 %191
  %193 = vrot.lane.b32.xlu0 %v30, 126
  %v194 = vpop.permute.xlu0 %193
  %195 = vrot.lane.b32.xlu0 %v31, 126
  %v196 = vpop.permute.xlu0 %195
  %197 = vrot.lane.b32.xlu0 %v32, 126
  %v198 = vpop.permute.xlu0 %197
  %199 = vrot.lane.b32.xlu0 %v33, 126
  %v200 = vpop.permute.xlu0 %199
  %201 = vrot.lane.b32.xlu0 %v34, 126
  %v202 = vpop.permute.xlu0 %201
  %v227 = vadd.f32 %v131, %v156
  %v228 = vadd.f32 %v132, %v158
  %v229 = vadd.f32 %v133, %v160
  %v230 = vadd.f32 %v134, %v162
  %v231 = vadd.f32 %v135, %v164
  %v232 = vadd.f32 %v136, %v166
  %v233 = vadd.f32 %v137, %v168
  %v234 = vadd.f32 %v138, %v170
  %v235 = vadd.f32 %v139, %v172
  %v236 = vadd.f32 %v140, %v174
  %v237 = vadd.f32 %v141, %v176
  %v238 = vadd.f32 %v142, %v178
  %v239 = vadd.f32 %v143, %v180
  %v240 = vadd.f32 %v144, %v182
  %v241 = vadd.f32 %v145, %v184
  %v242 = vadd.f32 %v146, %v186
  %v243 = vadd.f32 %v147, %v188
  %v244 = vadd.f32 %v148, %v190
  %v245 = vadd.f32 %v149, %v192
  %v246 = vadd.f32 %v150, %v194
  %v247 = vadd.f32 %v151, %v196
  %v248 = vadd.f32 %v152, %v198
  %v249 = vadd.f32 %v153, %v200
  %v250 = vadd.f32 %v154, %v202
  %vm275 = vcmask 1046528
  %v276 = vrot.slane %v227, 1
  %v277 = vrot.slane %v228, 1
  %v278 = vsel %vm275, %v276, %v277
  %v279 = vrot.slane %v229, 1
  %v280 = vsel %vm275, %v277, %v279
  %v281 = vrot.slane %v230, 1
  %v282 = vrot.slane %v231, 1
  %v283 = vsel %vm275, %v281, %v282
  %v284 = vrot.slane %v232, 1
  %v285 = vsel %vm275, %v282, %v284
  %v286 = vrot.slane %v233, 1
  %v287 = vrot.slane %v234, 1
  %v288 = vsel %vm275, %v286, %v287
  %v289 = vrot.slane %v235, 1
  %v290 = vsel %vm275, %v287, %v289
  %v291 = vrot.slane %v236, 1
  %v292 = vrot.slane %v237, 1
  %v293 = vsel %vm275, %v291, %v292
  %v294 = vrot.slane %v238, 1
  %v295 = vsel %vm275, %v292, %v294
  %v296 = vrot.slane %v239, 1
  %v297 = vrot.slane %v240, 1
  %v298 = vsel %vm275, %v296, %v297
  %v299 = vrot.slane %v241, 1
  %v300 = vsel %vm275, %v297, %v299
  %v301 = vrot.slane %v242, 1
  %v302 = vrot.slane %v243, 1
  %v303 = vsel %vm275, %v301, %v302
  %v304 = vrot.slane %v244, 1
  %v305 = vsel %vm275, %v302, %v304
  %v306 = vrot.slane %v245, 1
  %v307 = vrot.slane %v246, 1
  %v308 = vsel %vm275, %v306, %v307
  %v309 = vrot.slane %v247, 1
  %v310 = vsel %vm275, %v307, %v309
  %v311 = vrot.slane %v248, 1
  %v312 = vrot.slane %v249, 1
  %v313 = vsel %vm275, %v311, %v312
  %v314 = vrot.slane %v250, 1
  %v315 = vsel %vm275, %v312, %v314
  %v332 = vadd.f32 %v227, %v278
  %v333 = vadd.f32 %v228, %v280
  %v334 = vadd.f32 %v230, %v283
  %v335 = vadd.f32 %v231, %v285
  %v336 = vadd.f32 %v233, %v288
  %v337 = vadd.f32 %v234, %v290
  %v338 = vadd.f32 %v236, %v293
  %v339 = vadd.f32 %v237, %v295
  %v340 = vadd.f32 %v239, %v298
  %v341 = vadd.f32 %v240, %v300
  %v342 = vadd.f32 %v242, %v303
  %v343 = vadd.f32 %v243, %v305
  %v344 = vadd.f32 %v245, %v308
  %v345 = vadd.f32 %v246, %v310
  %v346 = vadd.f32 %v248, %v313
  %v347 = vadd.f32 %v249, %v315
  %vm348 = vcmask 1045504
  %v349 = vrot.slane %v227, 2
  %v350 = vrot.slane %v228, 2
  %v351 = vsel %vm348, %v349, %v350
  %v352 = vrot.slane %v229, 2
  %v353 = vsel %vm348, %v350, %v352
  %v354 = vrot.slane %v230, 2
  %v355 = vrot.slane %v231, 2
  %v356 = vsel %vm348, %v354, %v355
  %v357 = vrot.slane %v232, 2
  %v358 = vsel %vm348, %v355, %v357
  %v359 = vrot.slane %v233, 2
  %v360 = vrot.slane %v234, 2
  %v361 = vsel %vm348, %v359, %v360
  %v362 = vrot.slane %v235, 2
  %v363 = vsel %vm348, %v360, %v362
  %v364 = vrot.slane %v236, 2
  %v365 = vrot.slane %v237, 2
  %v366 = vsel %vm348, %v364, %v365
  %v367 = vrot.slane %v238, 2
  %v368 = vsel %vm348, %v365, %v367
  %v369 = vrot.slane %v239, 2
  %v370 = vrot.slane %v240, 2
  %v371 = vsel %vm348, %v369, %v370
  %v372 = vrot.slane %v241, 2
  %v373 = vsel %vm348, %v370, %v372
  %v374 = vrot.slane %v242, 2
  %v375 = vrot.slane %v243, 2
  %v376 = vsel %vm348, %v374, %v375
  %v377 = vrot.slane %v244, 2
  %v378 = vsel %vm348, %v375, %v377
  %v379 = vrot.slane %v245, 2
  %v380 = vrot.slane %v246, 2
  %v381 = vsel %vm348, %v379, %v380
  %v382 = vrot.slane %v247, 2
  %v383 = vsel %vm348, %v380, %v382
  %v384 = vrot.slane %v248, 2
  %v385 = vrot.slane %v249, 2
  %v386 = vsel %vm348, %v384, %v385
  %v387 = vrot.slane %v250, 2
  %v388 = vsel %vm348, %v385, %v387
  %v405 = vadd.f32 %v332, %v351
  %v406 = vadd.f32 %v333, %v353
  %v407 = vadd.f32 %v334, %v356
  %v408 = vadd.f32 %v335, %v358
  %v409 = vadd.f32 %v336, %v361
  %v410 = vadd.f32 %v337, %v363
  %v411 = vadd.f32 %v338, %v366
  %v412 = vadd.f32 %v339, %v368
  %v413 = vadd.f32 %v340, %v371
  %v414 = vadd.f32 %v341, %v373
  %v415 = vadd.f32 %v342, %v376
  %v416 = vadd.f32 %v343, %v378
  %v417 = vadd.f32 %v344, %v381
  %v418 = vadd.f32 %v345, %v383
  %v419 = vadd.f32 %v346, %v386
  %v420 = vadd.f32 %v347, %v388
  %v421 = vld [vmem:[%s1] sm:$0xff]
  %v422 = vld [vmem:[%s1 + $0x8] sm:$0xff]
  %v423 = vmul.f32 %v405, %v421
  %v424 = vmul.f32 %v406, %v422
  %v425 = vmul.f32 %v407, %v421
  %v426 = vmul.f32 %v408, %v422
  %v427 = vmul.f32 %v409, %v421
  %v428 = vmul.f32 %v410, %v422
  %v429 = vmul.f32 %v411, %v421
  %v430 = vmul.f32 %v412, %v422
  %v431 = vmul.f32 %v413, %v421
  %v432 = vmul.f32 %v414, %v422
  %v433 = vmul.f32 %v415, %v421
  %v434 = vmul.f32 %v416, %v422
  %v435 = vmul.f32 %v417, %v421
  %v436 = vmul.f32 %v418, %v422
  %v437 = vmul.f32 %v419, %v421
  %v438 = vmul.f32 %v420, %v422
  %vm439 = vcmask 130048
  %440 = vst.msk [vmem:[%s2] sm:$0xff] %vm439, %v423
  %441 = vst.msk [vmem:[%s2 + $0x8] sm:$0xff] %vm439, %v424
  %442 = vst.msk [vmem:[%s2 + $0x10] sm:$0xff] %vm439, %v425
  %443 = vst.msk [vmem:[%s2 + $0x18] sm:$0xff] %vm439, %v426
  %444 = vst.msk [vmem:[%s2 + $0x20] sm:$0xff] %vm439, %v427
  %445 = vst.msk [vmem:[%s2 + $0x28] sm:$0xff] %vm439, %v428
  %446 = vst.msk [vmem:[%s2 + $0x30] sm:$0xff] %vm439, %v429
  %447 = vst.msk [vmem:[%s2 + $0x38] sm:$0xff] %vm439, %v430
  %448 = vst.msk [vmem:[%s2 + $0x40] sm:$0xff] %vm439, %v431
  %449 = vst.msk [vmem:[%s2 + $0x48] sm:$0xff] %vm439, %v432
  %450 = vst.msk [vmem:[%s2 + $0x50] sm:$0xff] %vm439, %v433
  %451 = vst.msk [vmem:[%s2 + $0x58] sm:$0xff] %vm439, %v434
  %452 = vst.msk [vmem:[%s2 + $0x60] sm:$0xff] %vm439, %v435
  %453 = vst.msk [vmem:[%s2 + $0x68] sm:$0xff] %vm439, %v436
  %454 = vst.msk [vmem:[%s2 + $0x70] sm:$0xff] %vm439, %v437
  %455 = vst.msk [vmem:[%s2 + $0x78] sm:$0xff] %vm439, %v438
  // Predicated region
  $region10: #{_lambda_.6} parent=0 // pred_check
    _
  $region11: #{_lambda_.6} parent=0 // pred_check_branch
    %457 = sbr.rel (0) target = $region13
  $region12: #{_lambda_.6} parent=0 // pred_region
    _
  $region13: #{_lambda_.6} parent=0 // pred_fallthru
    _
  // Predicated region
  $region14: #{_lambda_.6} parent=0 // pred_check
    _
  $region15: #{_lambda_.6} parent=0 // pred_check_branch
    %459 = sbr.rel (0) target = $region17
  $region16: #{_lambda_.6} parent=0 // pred_region
    _
  $region17: #{_lambda_.6} parent=0 // pred_fallthru
    _

</llo_original>
